<compile_context>
chip_gen: v5e
topology: v5e:2x2
jax: 0.10.0
libtpu: 0.0.40
codegen_flags: <defaults>
</compile_context>

<pallas_src>
import functools
import math

import jax
import jax.numpy as jnp
import numpy as np
from jax.experimental import pallas as pl
from jax.experimental.pallas import tpu as pltpu

LANE = 128  # TPU lane width; hidden / output feature dims are padded to this.


def _round_up(x, m):
    return ((x + m - 1) // m) * m


def _gelu_exact(x):
    # Matches torch.nn.GELU() default (erf-based, NOT the tanh approximation).
    # TODO(synk): jax.nn.gelu(approximate=True) would route through the idle
    # EUP slot, but it changes numerics vs. the PyTorch module, so keep erf.
    return 0.5 * x * (1.0 + jax.lax.erf(x * (1.0 / math.sqrt(2.0))))


# --------------------------------------------------------------------------
# Fused Pallas kernel:
#   (Linear + GELU) x n_activated   ->   one folded epilogue matmul
# The epilogue matrix = W_last_build_mlp @ W_final @ [I_dpem | S_scatter],
# so a single MXU pass produces both unique_elements and the flattened
# symmetric Pmatrix in disjoint lane ranges of one (tb, 128) output.
# --------------------------------------------------------------------------
def _make_kernel(n_mid):
    def kernel(x_ref, w0_ref, b0_ref, *rest):
        if n_mid > 0:
            wm_ref, bm_ref, wt_ref, bt_ref, out_ref = rest
        else:
            wt_ref, bt_ref, out_ref = rest
        # First activated layer: (tb, in_dim) @ (in_dim, 128); the padded
        # output lanes stay exactly zero (zero weight/bias pad, gelu(0)==0).
        h = jnp.dot(x_ref[...], w0_ref[...],
                    preferred_element_type=jnp.float32) + b0_ref[...]
        h = _gelu_exact(h)
        # Remaining activated hidden layers (weights stay VMEM-resident).
        for i in range(n_mid):
            h = jnp.dot(h, wm_ref[i],
                        preferred_element_type=jnp.float32) + bm_ref[i]
            h = _gelu_exact(h)
        # Folded epilogue: last build_mlp linear + final_layer + Pmatrix
        # scatter in one MXU pass; single lane-dense store.
        out_ref[...] = jnp.dot(h, wt_ref[...],
                               preferred_element_type=jnp.float32) + bt_ref[...]
    return kernel


# --------------------------------------------------------------------------
# Host-side packing (done ONCE at model init)
# --------------------------------------------------------------------------
def pack_params(weights, biases, output_dim, matrix_type):
    """Pad activated layers to 128 lanes and fold all trailing no-activation
    linears + the Pmatrix scatter into one (128,128) epilogue matrix."""
    n_layers = len(weights)
    n_act = n_layers - 2          # build_mlp hidden layers (GELU-activated)
    assert n_act >= 1, "hidden_dims must be non-empty"
    n_mid = n_act - 1

    max_offset = (matrix_type - 1) // 2
    dpem = output_dim + sum(output_dim - k for k in range(1, max_offset + 1))
    d2 = output_dim * output_dim
    assert dpem + d2 <= LANE, "merged output must fit in 128 lanes"

    Ws = [np.asarray(w, np.float64) for w in weights]
    Bs = [np.asarray(b, np.float64).reshape(1, -1) for b in biases]
    in_dim = Ws[0].shape[0]
    assert all(w.shape[1] <= LANE for w in Ws)

    # First activated layer, kept at its true fan-in (x is NOT lane-padded).
    w0 = np.zeros((in_dim, LANE), np.float32)
    b0 = np.zeros((1, LANE), np.float32)
    w0[:, :Ws[0].shape[1]] = Ws[0]
    b0[0, :Bs[0].shape[1]] = Bs[0]

    # Middle activated layers (stacked; VMEM-resident across the batch grid).
    w_mid = b_mid = None
    if n_mid > 0:
        w_mid = np.zeros((n_mid, LANE, LANE), np.float32)
        b_mid = np.zeros((n_mid, 1, LANE), np.float32)
        for i in range(n_mid):
            w, b = Ws[1 + i], Bs[1 + i]
            w_mid[i, :w.shape[0], :w.shape[1]] = w
            b_mid[i, 0, :b.shape[1]] = b

    # Fold every trailing no-activation linear into one matrix (f64 exact).
    Wt, bt = Ws[n_act], Bs[n_act]
    for j in range(n_act + 1, n_layers):
        bt = bt @ Ws[j] + Bs[j]
        Wt = Wt @ Ws[j]

    # Selection matrix E: unique elements -> [unique | flattened Pmatrix].
    # Each P_flat column has exactly one 1, so P entries are bit-identical
    # duplicates of the corresponding unique-element lanes.
    E = np.zeros((dpem, dpem + d2), np.float64)
    for k in range(dpem):
        E[k, k] = 1.0                                   # pass-through feats
    for k in range(output_dim):
        E[k, dpem + k * output_dim + k] = 1.0           # diagonal
    u = output_dim
    for offset in range(1, max_offset + 1):
        for k in range(output_dim - offset):
            E[u, dpem + k * output_dim + (k + offset)] = 1.0
            E[u, dpem + (k + offset) * output_dim + k] = 1.0
            u += 1
    Wt = Wt @ E
    bt = bt @ E

    w_tail = np.zeros((LANE, LANE), np.float32)
    b_tail = np.zeros((1, LANE), np.float32)
    w_tail[:Wt.shape[0], :Wt.shape[1]] = Wt
    b_tail[0, :bt.shape[1]] = bt

    return dict(
        w0=jnp.asarray(w0), b0=jnp.asarray(b0),
        w_mid=None if w_mid is None else jnp.asarray(w_mid),
        b_mid=None if b_mid is None else jnp.asarray(b_mid),
        w_tail=jnp.asarray(w_tail), b_tail=jnp.asarray(b_tail),
        n_mid=n_mid, in_dim=in_dim, dpem=dpem,
    )


def _choose_tb(batch):
    """Batch tile: large tiles amortize ~0.35us/grid-step overhead; keep a
    multiple of 8, cap at 2048 (safe vs. v5e's 16 MiB scoped-VMEM default),
    and keep >= 2 grid steps once batch is big enough (v7x megacore)."""
    bp8 = _round_up(batch, 8)
    if bp8 <= 16:
        return bp8
    return min(2048, _round_up((bp8 + 1) // 2, 8))


def mslp_pallas_forward(x_pad, packed, tb):
    batch_pad, in_dim = x_pad.shape
    n_mid = packed["n_mid"]
    grid = (batch_pad // tb,)

    inputs = [x_pad, packed["w0"], packed["b0"]]
    in_specs = [
        pl.BlockSpec((tb, in_dim), lambda i: (i, 0)),         # x tile (unpadded lanes)
        pl.BlockSpec((in_dim, LANE), lambda i: (0, 0)),       # first weight (resident)
        pl.BlockSpec((1, LANE), lambda i: (0, 0)),            # first bias
    ]
    if n_mid > 0:
        inputs += [packed["w_mid"], packed["b_mid"]]
        in_specs += [
            pl.BlockSpec((n_mid, LANE, LANE), lambda i: (0, 0, 0)),  # mid weights
            pl.BlockSpec((n_mid, 1, LANE), lambda i: (0, 0, 0)),     # mid biases
        ]
    inputs += [packed["w_tail"], packed["b_tail"]]
    in_specs += [
        pl.BlockSpec((LANE, LANE), lambda i: (0, 0)),         # folded epilogue matrix
        pl.BlockSpec((1, LANE), lambda i: (0, 0)),            # folded epilogue bias
    ]

    return pl.pallas_call(
        _make_kernel(n_mid),
        out_shape=jax.ShapeDtypeStruct((batch_pad, LANE), jnp.float32),
        grid_spec=pltpu.PrefetchScalarGridSpec(
            num_scalar_prefetch=0,
            grid=grid,
            in_specs=in_specs,
            out_specs=pl.BlockSpec((tb, LANE), lambda i: (i, 0)),   # merged output
        ),
        compiler_params=pltpu.CompilerParams(
            dimension_semantics=("parallel",),   # megacore sharding on v7x
        ),
    )(*inputs)


def make_mslp_forward(weights, biases, output_dim, matrix_type):
    """Pack params once; return a jitted forward: x -> (unique_elements, eigenvalues)."""
    packed = pack_params(weights, biases, output_dim, matrix_type)
    dpem = packed["dpem"]
    d2 = output_dim * output_dim

    @jax.jit
    def forward(x):
        batch = x.shape[0]
        tb = _choose_tb(batch)
        batch_pad = _round_up(batch, tb)
        x32 = x.astype(jnp.float32)
        if batch_pad != batch:
            x32 = jnp.pad(x32, ((0, batch_pad - batch), (0, 0)))
        out = mslp_pallas_forward(x32, packed, tb)
        unique_elements = out[:batch, :dpem]
        P = out[:batch, dpem:dpem + d2].reshape(batch, output_dim, output_dim)
        # TODO(synk): torch.linalg.eig has no Pallas/TPU equivalent.  P is real
        # symmetric by construction (parametric_mode=False); the module sorts
        # eig's output by real part ascending, which equals eigh's ascending
        # order (up to ties).  Cast to complex64 to mirror torch's eig dtype.
        eigenvalues = jnp.linalg.eigh(P)[0].astype(jnp.complex64)
        return unique_elements, eigenvalues

    return forward


# --------------------------------------------------------------------------
# Pure-JAX reference (for correctness check only)
# --------------------------------------------------------------------------
def _mlp_ref(x, weights, biases, n_activated):
    h = x
    for i, (w, b) in enumerate(zip(weights, biases)):
        h = h @ w + b
        if i < n_activated:
            h = _gelu_exact(h)
    return h


def _pmatrix_ref(feats, output_dim, matrix_type):
    batch = feats.shape[0]
    max_offset = (matrix_type - 1) // 2
    P = jnp.zeros((batch, output_dim, output_dim), feats.dtype)
    diag = jnp.arange(output_dim)
    P = P.at[:, diag, diag].set(feats[:, :output_dim])
    col = output_dim
    for offset in range(1, max_offset + 1):
        for k in range(output_dim - offset):
            P = P.at[:, k, k + offset].set(feats[:, col])
            P = P.at[:, k + offset, k].set(feats[:, col])
            col += 1
    return P


def init_linear(key, fan_in, fan_out):
    """PyTorch-style Linear init: U(-1/sqrt(fan_in), 1/sqrt(fan_in))."""
    kw, kb = jax.random.split(key)
    bound = 1.0 / math.sqrt(fan_in)
    w = jax.random.uniform(kw, (fan_in, fan_out), jnp.float32, -bound, bound)
    b = jax.random.uniform(kb, (1, fan_out), jnp.float32, -bound, bound)
    return w, b


if __name__ == "__main__":
    # Module hyperparameters (architecture='nn', activation='gelu').
    input_dim = 4
    hidden_dims = [32, 32]
    output_dim = 4
    matrix_type = 3                      # tri-diagonal
    max_offset = (matrix_type - 1) // 2
    dpem_elements = output_dim + sum(output_dim - k for k in range(1, max_offset + 1))
    batch = 8

    # build_mlp(input_dim, hidden_dims, hidden_dims[-1], GELU) + final_layer:
    layer_dims = []
    prev = input_dim
    for h in hidden_dims:
        layer_dims.append((prev, h))                      # Linear + GELU
        prev = h
    layer_dims.append((prev, hidden_dims[-1]))            # last linear of build_mlp (no act)
    layer_dims.append((hidden_dims[-1], dpem_elements))   # final_layer (no act)
    n_activated = len(hidden_dims)

    key = jax.random.PRNGKey(0)
    keys = jax.random.split(key, len(layer_dims) + 1)
    weights, biases = [], []
    for i, (fi, fo) in enumerate(layer_dims):
        w, b = init_linear(keys[i], fi, fo)
        weights.append(w)
        biases.append(b)

    x = jax.random.normal(keys[-1], (batch, input_dim), jnp.float32)

    # Pack once at init, jit the whole forward (pad -> pallas_call -> slice -> eigh).
    mslp_forward = make_mslp_forward(weights, biases, output_dim, matrix_type)
    unique_elements, eigenvalues = mslp_forward(x)
    jax.block_until_ready((unique_elements, eigenvalues))

    # Correctness check vs. pure-JAX reference (unfused layers + explicit scatter).
    feats_ref = _mlp_ref(x, weights, biases, n_activated)
    P_ref = _pmatrix_ref(feats_ref, output_dim, matrix_type)
    eig_ref = jnp.linalg.eigh(P_ref)[0].astype(jnp.complex64)

    assert unique_elements.shape == (batch, dpem_elements)
    assert eigenvalues.shape == (batch, output_dim)
    assert jnp.allclose(unique_elements, feats_ref, atol=1e-5, rtol=1e-5)
    assert jnp.allclose(eigenvalues.real, eig_ref.real, atol=1e-5, rtol=1e-5)
    print("KERNEL_OK")
</pallas_src>

<mosaic_0001>
module attributes {stable_mosaic.version = 11 : i64} {
  func.func @kernel(%arg0: i32, %arg1: memref<8x4xf32, #tpu.memory_space<vmem>>, %arg2: memref<4x128xf32, #tpu.memory_space<vmem>>, %arg3: memref<1x128xf32, #tpu.memory_space<vmem>>, %arg4: memref<1x128x128xf32, #tpu.memory_space<vmem>>, %arg5: memref<1x1x128xf32, #tpu.memory_space<vmem>>, %arg6: memref<128x128xf32, #tpu.memory_space<vmem>>, %arg7: memref<1x128xf32, #tpu.memory_space<vmem>>, %arg8: memref<8x128xf32, #tpu.memory_space<vmem>>) attributes {dimension_semantics = [#tpu.dimension_semantics<parallel>], iteration_bounds = array<i64: 1>, scalar_prefetch = 0 : i64, scratch_operands = 0 : i64, tpu.core_type = #tpu.core_type<tc>, window_params = [{transform_indices = @transform_0, window_bounds = array<i64: 8, 4>}, {pipeline_mode = #tpu.pipeline_mode<synchronous>, transform_indices = @transform_1, window_bounds = array<i64: 4, 128>}, {pipeline_mode = #tpu.pipeline_mode<synchronous>, transform_indices = @transform_2, window_bounds = array<i64: 1, 128>}, {pipeline_mode = #tpu.pipeline_mode<synchronous>, transform_indices = @transform_3, window_bounds = array<i64: 1, 128, 128>}, {pipeline_mode = #tpu.pipeline_mode<synchronous>, transform_indices = @transform_4, window_bounds = array<i64: 1, 1, 128>}, {pipeline_mode = #tpu.pipeline_mode<synchronous>, transform_indices = @transform_5, window_bounds = array<i64: 128, 128>}, {pipeline_mode = #tpu.pipeline_mode<synchronous>, transform_indices = @transform_6, window_bounds = array<i64: 1, 128>}, {transform_indices = @transform_7, window_bounds = array<i64: 8, 128>}]} {
    %c0 = arith.constant 0 : index
    %c0_0 = arith.constant 0 : index
    %0 = vector.load %arg1[%c0, %c0_0] : memref<8x4xf32, #tpu.memory_space<vmem>>, vector<8x4xf32>
    %c0_1 = arith.constant 0 : index
    %c0_2 = arith.constant 0 : index
    %1 = vector.load %arg2[%c0_1, %c0_2] : memref<4x128xf32, #tpu.memory_space<vmem>>, vector<4x128xf32>
    %cst = arith.constant dense<0.000000e+00> : vector<8x128xf32>
    %2 = tpu.matmul %0, %1, %cst {dimension_numbers = #tpu.dot_dimension_numbers<[1], [0], [0], [1], [0, 0, 1, 1], [], []>} : vector<8x4xf32>, vector<4x128xf32>, vector<8x128xf32> -> vector<8x128xf32>
    %c0_3 = arith.constant 0 : index
    %c0_4 = arith.constant 0 : index
    %3 = vector.load %arg3[%c0_3, %c0_4] : memref<1x128xf32, #tpu.memory_space<vmem>>, vector<1x128xf32>
    %4 = vector.broadcast %3 : vector<1x128xf32> to vector<8x128xf32>
    %5 = arith.addf %2, %4 : vector<8x128xf32>
    %cst_5 = arith.constant 5.000000e-01 : f32
    %6 = vector.broadcast %cst_5 : f32 to vector<8x128xf32>
    %7 = arith.mulf %6, %5 : vector<8x128xf32>
    %cst_6 = arith.constant 0.707106769 : f32
    %8 = vector.broadcast %cst_6 : f32 to vector<8x128xf32>
    %9 = arith.mulf %5, %8 : vector<8x128xf32>
    %10 = math.erf %9 : vector<8x128xf32>
    %cst_7 = arith.constant 1.000000e+00 : f32
    %11 = vector.broadcast %cst_7 : f32 to vector<8x128xf32>
    %12 = arith.addf %11, %10 : vector<8x128xf32>
    %13 = arith.mulf %7, %12 : vector<8x128xf32>
    %c0_8 = arith.constant 0 : index
    %c0_9 = arith.constant 0 : index
    %c0_10 = arith.constant 0 : index
    %14 = vector.load %arg4[%c0_8, %c0_9, %c0_10] : memref<1x128x128xf32, #tpu.memory_space<vmem>>, vector<1x128x128xf32>
    %15 = vector.shape_cast %14 : vector<1x128x128xf32> to vector<128x128xf32>
    %cst_11 = arith.constant dense<0.000000e+00> : vector<8x128xf32>
    %16 = tpu.matmul %13, %15, %cst_11 {dimension_numbers = #tpu.dot_dimension_numbers<[1], [0], [0], [1], [0, 0, 1, 1], [], []>} : vector<8x128xf32>, vector<128x128xf32>, vector<8x128xf32> -> vector<8x128xf32>
    %c0_12 = arith.constant 0 : index
    %c0_13 = arith.constant 0 : index
    %c0_14 = arith.constant 0 : index
    %17 = vector.load %arg5[%c0_12, %c0_13, %c0_14] : memref<1x1x128xf32, #tpu.memory_space<vmem>>, vector<1x1x128xf32>
    %18 = vector.shape_cast %17 : vector<1x1x128xf32> to vector<1x128xf32>
    %19 = vector.broadcast %18 : vector<1x128xf32> to vector<8x128xf32>
    %20 = arith.addf %16, %19 : vector<8x128xf32>
    %cst_15 = arith.constant 5.000000e-01 : f32
    %21 = vector.broadcast %cst_15 : f32 to vector<8x128xf32>
    %22 = arith.mulf %21, %20 : vector<8x128xf32>
    %cst_16 = arith.constant 0.707106769 : f32
    %23 = vector.broadcast %cst_16 : f32 to vector<8x128xf32>
    %24 = arith.mulf %20, %23 : vector<8x128xf32>
    %25 = math.erf %24 : vector<8x128xf32>
    %cst_17 = arith.constant 1.000000e+00 : f32
    %26 = vector.broadcast %cst_17 : f32 to vector<8x128xf32>
    %27 = arith.addf %26, %25 : vector<8x128xf32>
    %28 = arith.mulf %22, %27 : vector<8x128xf32>
    %c0_18 = arith.constant 0 : index
    %c0_19 = arith.constant 0 : index
    %29 = vector.load %arg6[%c0_18, %c0_19] : memref<128x128xf32, #tpu.memory_space<vmem>>, vector<128x128xf32>
    %cst_20 = arith.constant dense<0.000000e+00> : vector<8x128xf32>
    %30 = tpu.matmul %28, %29, %cst_20 {dimension_numbers = #tpu.dot_dimension_numbers<[1], [0], [0], [1], [0, 0, 1, 1], [], []>} : vector<8x128xf32>, vector<128x128xf32>, vector<8x128xf32> -> vector<8x128xf32>
    %c0_21 = arith.constant 0 : index
    %c0_22 = arith.constant 0 : index
    %31 = vector.load %arg7[%c0_21, %c0_22] : memref<1x128xf32, #tpu.memory_space<vmem>>, vector<1x128xf32>
    %32 = vector.broadcast %31 : vector<1x128xf32> to vector<8x128xf32>
    %33 = arith.addf %30, %32 : vector<8x128xf32>
    %c0_23 = arith.constant 0 : index
    %c0_24 = arith.constant 0 : index
    %34 = vector.load %arg8[%c0_23, %c0_24] : memref<8x128xf32, #tpu.memory_space<vmem>>, vector<8x128xf32>
    tpu.vector_store %arg8[%c0_23, %c0_24], %33 {strides = array<i32>} : memref<8x128xf32, #tpu.memory_space<vmem>>, vector<8x128xf32>,
    return
  }
  func.func @transform_0(%arg0: i32) -> (i32, i32) {
    %c0_i32 = arith.constant 0 : i32
    %c0_i32_0 = arith.constant 0 : i32
    return %arg0, %c0_i32 : i32, i32
  }
  func.func @transform_1(%arg0: i32) -> (i32, i32) {
    %c0_i32 = arith.constant 0 : i32
    %c0_i32_0 = arith.constant 0 : i32
    %c0_i32_1 = arith.constant 0 : i32
    return %c0_i32, %c0_i32_0 : i32, i32
  }
  func.func @transform_2(%arg0: i32) -> (i32, i32) {
    %c0_i32 = arith.constant 0 : i32
    %c0_i32_0 = arith.constant 0 : i32
    %c0_i32_1 = arith.constant 0 : i32
    return %c0_i32, %c0_i32_0 : i32, i32
  }
  func.func @transform_3(%arg0: i32) -> (i32, i32, i32) {
    %c0_i32 = arith.constant 0 : i32
    %c0_i32_0 = arith.constant 0 : i32
    %c0_i32_1 = arith.constant 0 : i32
    %c0_i32_2 = arith.constant 0 : i32
    return %c0_i32, %c0_i32_0, %c0_i32_1 : i32, i32, i32
  }
  func.func @transform_4(%arg0: i32) -> (i32, i32, i32) {
    %c0_i32 = arith.constant 0 : i32
    %c0_i32_0 = arith.constant 0 : i32
    %c0_i32_1 = arith.constant 0 : i32
    %c0_i32_2 = arith.constant 0 : i32
    return %c0_i32, %c0_i32_0, %c0_i32_1 : i32, i32, i32
  }
  func.func @transform_5(%arg0: i32) -> (i32, i32) {
    %c0_i32 = arith.constant 0 : i32
    %c0_i32_0 = arith.constant 0 : i32
    %c0_i32_1 = arith.constant 0 : i32
    return %c0_i32, %c0_i32_0 : i32, i32
  }
  func.func @transform_6(%arg0: i32) -> (i32, i32) {
    %c0_i32 = arith.constant 0 : i32
    %c0_i32_0 = arith.constant 0 : i32
    %c0_i32_1 = arith.constant 0 : i32
    return %c0_i32, %c0_i32_0 : i32, i32
  }
  func.func @transform_7(%arg0: i32) -> (i32, i32) {
    %c0_i32 = arith.constant 0 : i32
    %c0_i32_0 = arith.constant 0 : i32
    return %arg0, %c0_i32 : i32, i32
  }
}

</mosaic_0001>

<llo_original>
// kernel: custom-call.2
$region0: #{custom-call.2}
  %s0 = inlined_call_operand.vmem [shape: f32[8,2,2], index: 0, kind: input, shape index: {}]
  %s1 = inlined_call_operand.vmem [shape: f32[8,2,2], index: 1, kind: input, shape index: {}]
  %s2 = inlined_call_operand.vmem [shape: f32[8,2,2], index: 2, kind: input, shape index: {}]
  %s3 = inlined_call_operand.vmem [shape: f32[8,2,2], index: 3, kind: input, shape index: {}]
  %s4 = inlined_call_operand.vmem [shape: f32[8,2], index: 4, kind: output, shape index: {0}]
  %s5 = inlined_call_operand.vmem [shape: f32[8,2], index: 5, kind: output, shape index: {1}]
  %s6 = inlined_call_operand.hbm [shape: f32[8,2,2], index: 6, kind: output, shape index: {2}]
  %s7 = inlined_call_operand.hbm [shape: f32[8,2,2], index: 7, kind: output, shape index: {3}]
  %s8 = inlined_call_operand.hbm [shape: f32[8,2,2], index: 8, kind: output, shape index: {4}]
  %s9 = inlined_call_operand.hbm [shape: f32[8,2,2], index: 9, kind: output, shape index: {5}]
  %10 = xla_tuple %s4, %s5, %s6, %s7, %s8, %s9
  $region1: #{custom-call.2} parent=0
    #allocation0 [shape = 'u8[4096]{0}', space=vmem, size = 0x1000, scoped, tag = 'operand span for operand 0']
    #allocation1 [shape = 'u8[2048]{0}', space=vmem, size = 0x800, scoped, tag = 'packed  for operand 0']
    #allocation2 [shape = 'u8[4096]{0}', space=vmem, size = 0x1000, scoped, tag = 'operand span for operand 1']
    #allocation3 [shape = 'u8[2048]{0}', space=vmem, size = 0x800, scoped, tag = 'packed  for operand 1']
    #allocation4 [shape = 'u8[4096]{0}', space=vmem, size = 0x1000, scoped, tag = 'operand span for operand 2']
    #allocation5 [shape = 'u8[2048]{0}', space=vmem, size = 0x800, scoped, tag = 'packed  for operand 2']
    #allocation6 [shape = 'u8[4096]{0}', space=vmem, size = 0x1000, scoped, tag = 'operand span for operand 3']
    #allocation7 [shape = 'u8[2048]{0}', space=vmem, size = 0x800, scoped, tag = 'packed  for operand 3']
    #allocation8 [shape = 'u8[8192]{0}', space=vmem, size = 0x2000, scoped, tag = 'operand span for operand 4']
    #allocation9 [shape = 'u8[8192]{0}', space=vmem, size = 0x2000, scoped, tag = 'operand span for operand 5']
    #allocation10 [shape = 'u8[4096]{0}', space=vmem, size = 0x1000, scoped, tag = 'operand span for operand 6']
    #allocation11 [shape = 'u8[2048]{0}', space=vmem, size = 0x800, scoped, tag = 'packed  for operand 6']
    #allocation12 [shape = 's32[2]{0}', space=sflag, size = 0x8, scoped, tag = 'scoped memory for custom-call.2']
    #allocation13 [shape = 'u8[4096]{0}', space=vmem, size = 0x1000, scoped, tag = 'operand span for operand 7']
    #allocation14 [shape = 'u8[2048]{0}', space=vmem, size = 0x800, scoped, tag = 'packed  for operand 7']
    #allocation15 [shape = 's32[2]{0}', space=sflag, size = 0x8, scoped, tag = 'scoped memory for custom-call.2']
    #allocation16 [shape = 'u8[4096]{0}', space=vmem, size = 0x1000, scoped, tag = 'operand span for operand 8']
    #allocation17 [shape = 'u8[2048]{0}', space=vmem, size = 0x800, scoped, tag = 'packed  for operand 8']
    #allocation18 [shape = 'u8[4096]{0}', space=vmem, size = 0x1000, scoped, tag = 'operand span for operand 9']
    #allocation19 [shape = 'u8[2048]{0}', space=vmem, size = 0x800, scoped, tag = 'packed  for operand 9']
    #allocation20 [shape = 's32[2]{0}', space=sflag, size = 0x8, scoped, tag = 'scoped memory for custom-call.2']
    %11 = vsyncpa [#allocation12], 0
    %s12 = scalar_lea.sflag [#allocation12], 1
    %13 = vsyncpa %s12, 0
    %14 = vsyncpa [#allocation15], 0
    %s15 = scalar_lea.sflag [#allocation15], 1
    %16 = vsyncpa %s15, 0
    %17 = vsyncpa [#allocation20], 0
    %s18 = scalar_lea.sflag [#allocation20], 1
    %19 = vsyncpa %s18, 0
    loop: start=0, step=1, limit=10
    $region2: #{custom-call.2} parent=1 // loop_pre_header
      _
    $region3: #{custom-call.2} parent=1 // loop_header
      %s21 = sphi 0, %s25
      %p22 = scmp.ge.s32.totalorder %s21, 10
      %s33 = sphi 0, %s35
      %s36 = sphi 0, %s33
      %s37 = sphi 0, %s36
      %s53 = sphi 0, %s37
      %s61 = sphi 0, %s63
      %s64 = sphi 0, %s61
      %s65 = sphi 0, %s64
      %s81 = sphi 0, %s65
    $region4: #{custom-call.2} parent=1 // loop_header_branch
      %24 = sbr.rel (%p22) target = $region8
    $region5: #{custom-call.2} parent=1 // loop_body
      %s26 = ssub.s32 %s21, 1
      %s27 = ssub.s32 %s21, 2
      %s28 = sadd.s32 %s21, 1
      %s29 = sshrl.u32 %s21, 3
      %s30 = sshrl.u32 %s28, 3
      %s31 = ssub.s32 %s29, %s30
      %p32 = scmp.eq.s32.totalorder %s31, 0
      %s34 = sadd.s32 %s33, 1
      %s35 = scalar_select %p32, %s33, %s34
      %p38 = pneg %p32
      %p39 = scmp.eq.s32.totalorder %s21, 7
      %p40 = por %p38, %p39
      %p41 = scmp.ne.s32.totalorder %s33, %s36
      %p42 = scmp.eq.s32.totalorder %s21, 0
      %p43 = por %p41, %p42
      %p44 = scmp.ne.s32.totalorder %s33, %s36
      %p45 = scmp.eq.s32.totalorder %s26, 7
      %p46 = por %p44, %p45
      %p47 = scmp.ne.s32.totalorder %s36, %s37
      %p48 = scmp.eq.s32.totalorder %s26, 0
      %p49 = por %p47, %p48
      %p50 = scmp.ne.s32.totalorder %s36, %s37
      %p51 = scmp.eq.s32.totalorder %s27, 7
      %p52 = por %p50, %p51
      %p54 = scmp.ne.s32.totalorder %s37, %s53
      %p55 = scmp.eq.s32.totalorder %s27, 0
      %p56 = por %p54, %p55
      %s57 = sshrl.u32 %s21, 3
      %s58 = sshrl.u32 %s28, 3
      %s59 = ssub.s32 %s57, %s58
      %p60 = scmp.eq.s32.totalorder %s59, 0
      %s62 = sadd.s32 %s61, 1
      %s63 = scalar_select %p60, %s61, %s62
      %p66 = pneg %p60
      %p67 = scmp.eq.s32.totalorder %s21, 7
      %p68 = por %p66, %p67
      %p69 = scmp.ne.s32.totalorder %s61, %s64
      %p70 = scmp.eq.s32.totalorder %s21, 0
      %p71 = por %p69, %p70
      %p72 = scmp.ne.s32.totalorder %s61, %s64
      %p73 = scmp.eq.s32.totalorder %s26, 7
      %p74 = por %p72, %p73
      %p75 = scmp.ne.s32.totalorder %s64, %s65
      %p76 = scmp.eq.s32.totalorder %s26, 0
      %p77 = por %p75, %p76
      %p78 = scmp.ne.s32.totalorder %s64, %s65
      %p79 = scmp.eq.s32.totalorder %s27, 7
      %p80 = por %p78, %p79
      %p82 = scmp.ne.s32.totalorder %s65, %s81
      %p83 = scmp.eq.s32.totalorder %s27, 0
      %p84 = por %p82, %p83
      %p85 = scmp.le.s32.totalorder 1, %s21
      %p86 = scmp.lt.s32.totalorder %s21, 9
      %p87 = pnand %p85, %p86
      %p88 = pneg %p87
      // Predicated region
      $region9: #{custom-call.2} parent=5 // pred_check
        _
      $region10: #{custom-call.2} parent=5 // pred_check_branch
        %90 = sbr.rel (%p87) target = $region12
      $region11: #{custom-call.2} parent=5 // pred_region
        %s91 = ssub.s32 %s21, 1
      $region12: #{custom-call.2} parent=5 // pred_fallthru
        _
      %p92 = scmp.lt.s32.totalorder %s21, 8
      // Predicated region
      $region13: #{custom-call.2} parent=5 // pred_check
        %p93 = pneg %p92
      $region14: #{custom-call.2} parent=5 // pred_check_branch
        %95 = sbr.rel (%p93) target = $region16
      $region15: #{custom-call.2} parent=5 // pred_region
        %s96 = sand.u32 %s21, 1
        %s97 = sand.u32 %s21, 1
        %s98 = smul.addr %s97, 2
        %s99 = scalar_lea.vmem [#allocation1], %s98
        %s100 = smul.addr %s21, 2
        %s101 = scalar_lea.vmem %s0, %s100
        // Predicated region
        $region17: #{custom-call.2} parent=15 // pred_check
          _
        $region18: #{custom-call.2} parent=15 // pred_check_branch
          %103 = sbr.rel (0) target = $region20
        $region19: #{custom-call.2} parent=15 // pred_region
          // Predicated region
          $region21: #{custom-call.2} parent=19 // pred_check
            _
          $region22: #{custom-call.2} parent=19 // pred_check_branch
            %105 = sbr.rel target = $region24
          $region23: #{custom-call.2} parent=19 // pred_region
            // Predicated region
            $region36: #{custom-call.2} parent=23 // pred_check
              _
            $region37: #{custom-call.2} parent=23 // pred_check_branch
              %121 = sbr.rel (0) target = $region39
            $region38: #{custom-call.2} parent=23 // pred_region
              %s123 = ssub.s32 4, 1
              loop: start=0, step=1, limit=1
              $region40: #{custom-call.2} parent=38 // loop_pre_header
                _
              $region41: #{custom-call.2} parent=38 // loop_header
                %s125 = sphi 0, %s129
                %p126 = scmp.ge.s32.totalorder %s125, 1
                %s130 = sphi %s101, %s101
                %s131 = sphi %s99, %s99
              $region42: #{custom-call.2} parent=38 // loop_header_branch
                %128 = sbr.rel (%p126) target = $region46
              $region43: #{custom-call.2} parent=38 // loop_body
                %v132 = vld [vmem:[%s130] sm:%s123]
                %133 = vst [vmem:[%s131] sm:%s123] %v132
              $region44: #{custom-call.2} parent=38 // loop_footer
                %s129 = sadd.s32 1, %s125
              $region45: #{custom-call.2} parent=38 // loop_footer_branch
                %124 = sbr.rel target = $region41
              $region46: #{custom-call.2} parent=38 // loop_exit
                _
            $region39: #{custom-call.2} parent=23 // pred_fallthru
              _
          $region24: #{custom-call.2} parent=19 // pred_fallthru
            _
          // Predicated region
          $region25: #{custom-call.2} parent=19 // pred_check
            _
          $region26: #{custom-call.2} parent=19 // pred_check_branch
            %107 = sbr.rel (0) target = $region28
          $region27: #{custom-call.2} parent=19 // pred_region
            %s109 = ssub.s32 4, 1
            loop: start=0, step=1, limit=1
            $region29: #{custom-call.2} parent=27 // loop_pre_header
              _
            $region30: #{custom-call.2} parent=27 // loop_header
              %s111 = sphi 0, %s115
              %p112 = scmp.ge.s32.totalorder %s111, 1
              %s116 = sphi %s101, %s101
              %s117 = sphi %s99, %s99
            $region31: #{custom-call.2} parent=27 // loop_header_branch
              %114 = sbr.rel (%p112) target = $region35
            $region32: #{custom-call.2} parent=27 // loop_body
              %v118 = vld [vmem:[%s116] sm:%s109]
              %119 = vst [vmem:[%s117] sm:%s109] %v118
            $region33: #{custom-call.2} parent=27 // loop_footer
              %s115 = sadd.s32 1, %s111
            $region34: #{custom-call.2} parent=27 // loop_footer_branch
              %110 = sbr.rel target = $region30
            $region35: #{custom-call.2} parent=27 // loop_exit
              _
          $region28: #{custom-call.2} parent=19 // pred_fallthru
            _
        $region20: #{custom-call.2} parent=15 // pred_fallthru
          _
        %134 = vnop
        %s135 = sand.u32 %s21, 1
        %s136 = sand.u32 %s21, 1
        %s137 = smul.addr %s136, 2
        %s138 = scalar_lea.vmem [#allocation3], %s137
        %s139 = smul.addr %s21, 2
        %s140 = scalar_lea.vmem %s1, %s139
        // Predicated region
        $region47: #{custom-call.2} parent=15 // pred_check
          _
        $region48: #{custom-call.2} parent=15 // pred_check_branch
          %142 = sbr.rel (0) target = $region50
        $region49: #{custom-call.2} parent=15 // pred_region
          // Predicated region
          $region51: #{custom-call.2} parent=49 // pred_check
            _
          $region52: #{custom-call.2} parent=49 // pred_check_branch
            %144 = sbr.rel target = $region54
          $region53: #{custom-call.2} parent=49 // pred_region
            // Predicated region
            $region66: #{custom-call.2} parent=53 // pred_check
              _
            $region67: #{custom-call.2} parent=53 // pred_check_branch
              %160 = sbr.rel (0) target = $region69
            $region68: #{custom-call.2} parent=53 // pred_region
              %s162 = ssub.s32 4, 1
              loop: start=0, step=1, limit=1
              $region70: #{custom-call.2} parent=68 // loop_pre_header
                _
              $region71: #{custom-call.2} parent=68 // loop_header
                %s164 = sphi 0, %s168
                %p165 = scmp.ge.s32.totalorder %s164, 1
                %s169 = sphi %s140, %s140
                %s170 = sphi %s138, %s138
              $region72: #{custom-call.2} parent=68 // loop_header_branch
                %167 = sbr.rel (%p165) target = $region76
              $region73: #{custom-call.2} parent=68 // loop_body
                %v171 = vld [vmem:[%s169] sm:%s162]
                %172 = vst [vmem:[%s170] sm:%s162] %v171
              $region74: #{custom-call.2} parent=68 // loop_footer
                %s168 = sadd.s32 1, %s164
              $region75: #{custom-call.2} parent=68 // loop_footer_branch
                %163 = sbr.rel target = $region71
              $region76: #{custom-call.2} parent=68 // loop_exit
                _
            $region69: #{custom-call.2} parent=53 // pred_fallthru
              _
          $region54: #{custom-call.2} parent=49 // pred_fallthru
            _
          // Predicated region
          $region55: #{custom-call.2} parent=49 // pred_check
            _
          $region56: #{custom-call.2} parent=49 // pred_check_branch
            %146 = sbr.rel (0) target = $region58
          $region57: #{custom-call.2} parent=49 // pred_region
            %s148 = ssub.s32 4, 1
            loop: start=0, step=1, limit=1
            $region59: #{custom-call.2} parent=57 // loop_pre_header
              _
            $region60: #{custom-call.2} parent=57 // loop_header
              %s150 = sphi 0, %s154
              %p151 = scmp.ge.s32.totalorder %s150, 1
              %s155 = sphi %s140, %s140
              %s156 = sphi %s138, %s138
            $region61: #{custom-call.2} parent=57 // loop_header_branch
              %153 = sbr.rel (%p151) target = $region65
            $region62: #{custom-call.2} parent=57 // loop_body
              %v157 = vld [vmem:[%s155] sm:%s148]
              %158 = vst [vmem:[%s156] sm:%s148] %v157
            $region63: #{custom-call.2} parent=57 // loop_footer
              %s154 = sadd.s32 1, %s150
            $region64: #{custom-call.2} parent=57 // loop_footer_branch
              %149 = sbr.rel target = $region60
            $region65: #{custom-call.2} parent=57 // loop_exit
              _
          $region58: #{custom-call.2} parent=49 // pred_fallthru
            _
        $region50: #{custom-call.2} parent=15 // pred_fallthru
          _
        %173 = vnop
        %s174 = sand.u32 %s21, 1
        %s175 = sand.u32 %s21, 1
        %s176 = smul.addr %s175, 2
        %s177 = scalar_lea.vmem [#allocation5], %s176
        %s178 = smul.addr %s21, 2
        %s179 = scalar_lea.vmem %s2, %s178
        // Predicated region
        $region77: #{custom-call.2} parent=15 // pred_check
          _
        $region78: #{custom-call.2} parent=15 // pred_check_branch
          %181 = sbr.rel (0) target = $region80
        $region79: #{custom-call.2} parent=15 // pred_region
          // Predicated region
          $region81: #{custom-call.2} parent=79 // pred_check
            _
          $region82: #{custom-call.2} parent=79 // pred_check_branch
            %183 = sbr.rel target = $region84
          $region83: #{custom-call.2} parent=79 // pred_region
            // Predicated region
            $region96: #{custom-call.2} parent=83 // pred_check
              _
            $region97: #{custom-call.2} parent=83 // pred_check_branch
              %199 = sbr.rel (0) target = $region99
            $region98: #{custom-call.2} parent=83 // pred_region
              %s201 = ssub.s32 4, 1
              loop: start=0, step=1, limit=1
              $region100: #{custom-call.2} parent=98 // loop_pre_header
                _
              $region101: #{custom-call.2} parent=98 // loop_header
                %s203 = sphi 0, %s207
                %p204 = scmp.ge.s32.totalorder %s203, 1
                %s208 = sphi %s179, %s179
                %s209 = sphi %s177, %s177
              $region102: #{custom-call.2} parent=98 // loop_header_branch
                %206 = sbr.rel (%p204) target = $region106
              $region103: #{custom-call.2} parent=98 // loop_body
                %v210 = vld [vmem:[%s208] sm:%s201]
                %211 = vst [vmem:[%s209] sm:%s201] %v210
              $region104: #{custom-call.2} parent=98 // loop_footer
                %s207 = sadd.s32 1, %s203
              $region105: #{custom-call.2} parent=98 // loop_footer_branch
                %202 = sbr.rel target = $region101
              $region106: #{custom-call.2} parent=98 // loop_exit
                _
            $region99: #{custom-call.2} parent=83 // pred_fallthru
              _
          $region84: #{custom-call.2} parent=79 // pred_fallthru
            _
          // Predicated region
          $region85: #{custom-call.2} parent=79 // pred_check
            _
          $region86: #{custom-call.2} parent=79 // pred_check_branch
            %185 = sbr.rel (0) target = $region88
          $region87: #{custom-call.2} parent=79 // pred_region
            %s187 = ssub.s32 4, 1
            loop: start=0, step=1, limit=1
            $region89: #{custom-call.2} parent=87 // loop_pre_header
              _
            $region90: #{custom-call.2} parent=87 // loop_header
              %s189 = sphi 0, %s193
              %p190 = scmp.ge.s32.totalorder %s189, 1
              %s194 = sphi %s179, %s179
              %s195 = sphi %s177, %s177
            $region91: #{custom-call.2} parent=87 // loop_header_branch
              %192 = sbr.rel (%p190) target = $region95
            $region92: #{custom-call.2} parent=87 // loop_body
              %v196 = vld [vmem:[%s194] sm:%s187]
              %197 = vst [vmem:[%s195] sm:%s187] %v196
            $region93: #{custom-call.2} parent=87 // loop_footer
              %s193 = sadd.s32 1, %s189
            $region94: #{custom-call.2} parent=87 // loop_footer_branch
              %188 = sbr.rel target = $region90
            $region95: #{custom-call.2} parent=87 // loop_exit
              _
          $region88: #{custom-call.2} parent=79 // pred_fallthru
            _
        $region80: #{custom-call.2} parent=15 // pred_fallthru
          _
        %212 = vnop
        %s213 = sand.u32 %s21, 1
        %s214 = sand.u32 %s21, 1
        %s215 = smul.addr %s214, 2
        %s216 = scalar_lea.vmem [#allocation7], %s215
        %s217 = smul.addr %s21, 2
        %s218 = scalar_lea.vmem %s3, %s217
        // Predicated region
        $region107: #{custom-call.2} parent=15 // pred_check
          _
        $region108: #{custom-call.2} parent=15 // pred_check_branch
          %220 = sbr.rel (0) target = $region110
        $region109: #{custom-call.2} parent=15 // pred_region
          // Predicated region
          $region111: #{custom-call.2} parent=109 // pred_check
            _
          $region112: #{custom-call.2} parent=109 // pred_check_branch
            %222 = sbr.rel target = $region114
          $region113: #{custom-call.2} parent=109 // pred_region
            // Predicated region
            $region126: #{custom-call.2} parent=113 // pred_check
              _
            $region127: #{custom-call.2} parent=113 // pred_check_branch
              %238 = sbr.rel (0) target = $region129
            $region128: #{custom-call.2} parent=113 // pred_region
              %s240 = ssub.s32 4, 1
              loop: start=0, step=1, limit=1
              $region130: #{custom-call.2} parent=128 // loop_pre_header
                _
              $region131: #{custom-call.2} parent=128 // loop_header
                %s242 = sphi 0, %s246
                %p243 = scmp.ge.s32.totalorder %s242, 1
                %s247 = sphi %s218, %s218
                %s248 = sphi %s216, %s216
              $region132: #{custom-call.2} parent=128 // loop_header_branch
                %245 = sbr.rel (%p243) target = $region136
              $region133: #{custom-call.2} parent=128 // loop_body
                %v249 = vld [vmem:[%s247] sm:%s240]
                %250 = vst [vmem:[%s248] sm:%s240] %v249
              $region134: #{custom-call.2} parent=128 // loop_footer
                %s246 = sadd.s32 1, %s242
              $region135: #{custom-call.2} parent=128 // loop_footer_branch
                %241 = sbr.rel target = $region131
              $region136: #{custom-call.2} parent=128 // loop_exit
                _
            $region129: #{custom-call.2} parent=113 // pred_fallthru
              _
          $region114: #{custom-call.2} parent=109 // pred_fallthru
            _
          // Predicated region
          $region115: #{custom-call.2} parent=109 // pred_check
            _
          $region116: #{custom-call.2} parent=109 // pred_check_branch
            %224 = sbr.rel (0) target = $region118
          $region117: #{custom-call.2} parent=109 // pred_region
            %s226 = ssub.s32 4, 1
            loop: start=0, step=1, limit=1
            $region119: #{custom-call.2} parent=117 // loop_pre_header
              _
            $region120: #{custom-call.2} parent=117 // loop_header
              %s228 = sphi 0, %s232
              %p229 = scmp.ge.s32.totalorder %s228, 1
              %s233 = sphi %s218, %s218
              %s234 = sphi %s216, %s216
            $region121: #{custom-call.2} parent=117 // loop_header_branch
              %231 = sbr.rel (%p229) target = $region125
            $region122: #{custom-call.2} parent=117 // loop_body
              %v235 = vld [vmem:[%s233] sm:%s226]
              %236 = vst [vmem:[%s234] sm:%s226] %v235
            $region123: #{custom-call.2} parent=117 // loop_footer
              %s232 = sadd.s32 1, %s228
            $region124: #{custom-call.2} parent=117 // loop_footer_branch
              %227 = sbr.rel target = $region120
            $region125: #{custom-call.2} parent=117 // loop_exit
              _
          $region118: #{custom-call.2} parent=109 // pred_fallthru
            _
        $region110: #{custom-call.2} parent=15 // pred_fallthru
          _
        %251 = vnop
      $region16: #{custom-call.2} parent=5 // pred_fallthru
        _
      %p252 = scmp.le.s32.totalorder 1, %s21
      %p253 = scmp.lt.s32.totalorder %s21, 9
      %p254 = pnand %p252, %p253
      %p255 = pneg %p254
      // Predicated region
      $region137: #{custom-call.2} parent=5 // pred_check
        _
      $region138: #{custom-call.2} parent=5 // pred_check_branch
        %257 = sbr.rel (%p254) target = $region140
      $region139: #{custom-call.2} parent=5 // pred_region
        #allocation21 [shape = 'f32[2,2]{1,0}', space=vmem, size = 0x1000, scoped, tag = 'a top-left matrix']
        #allocation22 [shape = 'f32[2,2]{1,0}', space=vmem, size = 0x1000, scoped, tag = 'a top-right matrix']
        #allocation23 [shape = 'f32[2,2]{1,0}', space=vmem, size = 0x1000, scoped, tag = 'a bottom-left matrix']
        #allocation24 [shape = 'f32[2,2]{1,0}', space=vmem, size = 0x1000, scoped, tag = 'a bottom-right matrix']
        %s258 = ssub.s32 %s21, 1
        %s259 = sand.u32 %s26, 1
        %s260 = sand.u32 %s26, 1
        %s261 = smul.addr %s260, 2
        %s262 = scalar_lea.vmem [#allocation1], %s261
        %s263 = sand.u32 %s26, 1
        %s264 = sand.u32 %s26, 1
        %s265 = smul.addr %s264, 2
        %s266 = scalar_lea.vmem [#allocation3], %s265
        %s267 = sand.u32 %s26, 1
        %s268 = sand.u32 %s26, 1
        %s269 = smul.addr %s268, 2
        %s270 = scalar_lea.vmem [#allocation5], %s269
        %s271 = sand.u32 %s26, 1
        %s272 = sand.u32 %s26, 1
        %s273 = smul.addr %s272, 2
        %s274 = scalar_lea.vmem [#allocation7], %s273
        %s275 = sand.u32 %s26, 1
        %s276 = sand.u32 %s26, 1
        %s277 = smul.addr %s276, 2
        %s278 = scalar_lea.vmem [#allocation1], %s277
        %s279 = sand.u32 %s26, 1
        %s280 = sand.u32 %s26, 1
        %s281 = smul.addr %s280, 2
        %s282 = scalar_lea.vmem [#allocation3], %s281
        %s283 = sand.u32 %s26, 1
        %s284 = sand.u32 %s26, 1
        %s285 = smul.addr %s284, 2
        %s286 = scalar_lea.vmem [#allocation5], %s285
        %s287 = sand.u32 %s26, 1
        %s288 = sand.u32 %s26, 1
        %s289 = smul.addr %s288, 2
        %s290 = scalar_lea.vmem [#allocation7], %s289
        %p291 = pneg %p49
        %p292 = pneg %p46
        %s293 = sand.u32 %s36, 1
        %s294 = sand.u32 %s36, 1
        %s295 = smul.addr %s294, 8
        %s296 = scalar_lea.vmem [#allocation8], %s295
        %p297 = pneg %p77
        %p298 = pneg %p74
        %s299 = sand.u32 %s64, 1
        %s300 = sand.u32 %s64, 1
        %s301 = smul.addr %s300, 8
        %s302 = scalar_lea.vmem [#allocation9], %s301
        %s303 = sand.u32 %s26, 1
        %s304 = scalar_lea.sflag [#allocation12], %s303
        %s305 = sand.u32 %s26, 1
        %s306 = smul.addr %s305, 2
        %s307 = scalar_lea.vmem [#allocation11], %s306
        %s308 = sand.u32 %s26, 1
        %s309 = scalar_lea.sflag [#allocation15], %s308
        %s310 = sand.u32 %s26, 1
        %s311 = smul.addr %s310, 2
        %s312 = scalar_lea.vmem [#allocation14], %s311
        %s313 = sand.u32 %s26, 1
        %s314 = scalar_lea.sflag [#allocation15], %s313
        %s315 = sand.u32 %s26, 1
        %s316 = smul.addr %s315, 2
        %s317 = scalar_lea.vmem [#allocation17], %s316
        %s318 = sand.u32 %s26, 1
        %s319 = scalar_lea.sflag [#allocation20], %s318
        %s320 = sand.u32 %s26, 1
        %s321 = smul.addr %s320, 2
        %s322 = scalar_lea.vmem [#allocation19], %s321
        %s324 = ssub.s32 4, 1
        %v325 = vld [vmem:[%s278] sm:%s324]
        %326 = vst [vmem:[#allocation0] sm:%s324] %v325
        %s328 = ssub.s32 4, 1
        %v329 = vld [vmem:[%s282] sm:%s328]
        %330 = vst [vmem:[#allocation2] sm:%s328] %v329
        %s332 = ssub.s32 4, 1
        %v333 = vld [vmem:[%s286] sm:%s332]
        %334 = vst [vmem:[#allocation4] sm:%s332] %v333
        %s336 = ssub.s32 4, 1
        %v337 = vld [vmem:[%s290] sm:%s336]
        %338 = vst [vmem:[#allocation6] sm:%s336] %v337
        %s339 = sshrl.u32 %s26, 3
        %s340 = sshrl.u32 %s26, 3
        %s341 = smov [#allocation21]
        %v342 = vld [vmem:[#allocation0] sm:$0xff]
        %343 = vst [vmem:[%s341] sm:$0xff] %v342
        %s344 = smov [#allocation22]
        %v345 = vld [vmem:[#allocation2] sm:$0xff]
        %346 = vst [vmem:[%s344] sm:$0xff] %v345
        %s347 = smov [#allocation23]
        %v348 = vld [vmem:[#allocation4] sm:$0xff]
        %349 = vst [vmem:[%s347] sm:$0xff] %v348
        %s350 = smov [#allocation24]
        %v351 = vld [vmem:[#allocation6] sm:$0xff]
        %352 = vst [vmem:[%s350] sm:$0xff] %v351
        %353 = vst [vmem:[#allocation10] sm:$0xff] 0.0
        %354 = vst [vmem:[#allocation13] sm:$0xff] 0.0
        %355 = vst [vmem:[#allocation16] sm:$0xff] 0.0
        %356 = vst [vmem:[#allocation18] sm:$0xff] 0.0
        %s357 = smov [#allocation10]
        %v358 = vlaneseq
        %v359 = vand.u32 %v358, 127
        %v360 = vmov %v359
        %v361 = vlaneseq
        %v362 = vshrl.u32 %v361, 7
        %v363 = vmov %v362
        %v364 = vld [vmem:[%s357] sm:$0x3]
        %vm367 = vcmp.eq.s32.totalorder %v363, %v360
        %v368 = vsel %vm367, 1.0, %v364
        %369 = vst [vmem:[%s357] sm:$0x3] %v368
        %s370 = smov [#allocation18]
        %v371 = vlaneseq
        %v372 = vand.u32 %v371, 127
        %v373 = vmov %v372
        %v374 = vlaneseq
        %v375 = vshrl.u32 %v374, 7
        %v376 = vmov %v375
        %v377 = vld [vmem:[%s370] sm:$0x3]
        %vm380 = vcmp.eq.s32.totalorder %v376, %v373
        %v381 = vsel %vm380, 1.0, %v377
        %382 = vst [vmem:[%s370] sm:$0x3] %v381
        // While loop
        $region141: #{custom-call.2} parent=139 // loop_pre_header
          _
        $region142: #{custom-call.2} parent=139 // loop_header
          %s384 = sphi 0, %s966
          %v385 = vlaneseq
          %v386 = vand.u32 %v385, 127
          %v387 = vmov %v386
          %v388 = vlaneseq
          %v389 = vshrl.u32 %v388, 7
          %v390 = vmov %v389
          %s391 = smov [#allocation21]
          %v392 = vlaneseq
          %v393 = vand.u32 %v392, 127
          %vm394 = vcmp.ge.s32.totalorder %v393, 0
          %vm395 = vcmp.lt.s32.totalorder %v393, 2
          %vm396 = vmand %vm394, %vm395
          %v397 = vld [vmem:[%s391] sm:$0x3]
          %v398 = vsel %vm396, %v397, 0.0
          %v399 = vmul.f32 %v398, %v398
          %vm402 = vcmp.eq.s32.totalorder %v390, %v387
          %v403 = vsel %vm402, 0.0, %v399
          %v404 = vlaneseq
          %v405 = vand.u32 %v404, 127
          %v406 = vmov %v405
          %v407 = vlaneseq
          %v408 = vshrl.u32 %v407, 7
          %v409 = vmov %v408
          %s410 = smov [#allocation22]
          %v411 = vlaneseq
          %v412 = vand.u32 %v411, 127
          %vm413 = vcmp.ge.s32.totalorder %v412, 0
          %vm414 = vcmp.lt.s32.totalorder %v412, 2
          %vm415 = vmand %vm413, %vm414
          %v416 = vld [vmem:[%s410] sm:$0x3]
          %v417 = vsel %vm415, %v416, 0.0
          %v418 = vmul.f32 %v417, %v417
          %v419 = vadd.f32 %v403, %v418
          %v420 = vadd.f32 %v399, %v418
          %v421 = vlaneseq
          %v422 = vand.u32 %v421, 127
          %v423 = vmov %v422
          %v424 = vlaneseq
          %v425 = vshrl.u32 %v424, 7
          %v426 = vmov %v425
          %s427 = smov [#allocation23]
          %v428 = vlaneseq
          %v429 = vand.u32 %v428, 127
          %vm430 = vcmp.ge.s32.totalorder %v429, 0
          %vm431 = vcmp.lt.s32.totalorder %v429, 2
          %vm432 = vmand %vm430, %vm431
          %v433 = vld [vmem:[%s427] sm:$0x3]
          %v434 = vsel %vm432, %v433, 0.0
          %v435 = vmul.f32 %v434, %v434
          %v436 = vadd.f32 %v419, %v435
          %v437 = vadd.f32 %v420, %v435
          %v438 = vlaneseq
          %v439 = vand.u32 %v438, 127
          %v440 = vmov %v439
          %v441 = vlaneseq
          %v442 = vshrl.u32 %v441, 7
          %v443 = vmov %v442
          %s444 = smov [#allocation24]
          %v445 = vlaneseq
          %v446 = vand.u32 %v445, 127
          %vm447 = vcmp.ge.s32.totalorder %v446, 0
          %vm448 = vcmp.lt.s32.totalorder %v446, 2
          %vm449 = vmand %vm447, %vm448
          %v450 = vld [vmem:[%s444] sm:$0x3]
          %v451 = vsel %vm449, %v450, 0.0
          %v452 = vmul.f32 %v451, %v451
          %vm455 = vcmp.eq.s32.totalorder %v443, %v440
          %v456 = vsel %vm455, 0.0, %v452
          %v457 = vadd.f32 %v436, %v456
          %v458 = vadd.f32 %v437, %v452
          %459 = vadd.xlane.f32.xlu0 %v458
          %v460 = vpop.xlane.xlu0 %459
          %v461 = vrot.slane %v460, 4
          %v462 = vadd.f32 %v460, %v461
          %v463 = vrot.slane %v462, 2
          %v464 = vadd.f32 %v462, %v463
          %v465 = vrot.slane %v464, 1
          %v466 = vadd.f32 %v464, %v465
          %467 = vadd.xlane.f32.xlu0 %v457
          %v468 = vpop.xlane.xlu0 %467
          %v469 = vrot.slane %v468, 4
          %v470 = vadd.f32 %v468, %v469
          %v471 = vrot.slane %v470, 2
          %v472 = vadd.f32 %v470, %v471
          %v473 = vrot.slane %v472, 1
          %v474 = vadd.f32 %v472, %v473
          %s475 = vtos %v474
          %s476 = vtos %v466
          %s477 = smul.f32 1e-10, %s476
          %p478 = scmp.le.f32.partialorder %s475, %s477
          %p479 = scmp.ge.s32.totalorder %s384, 15
          %p480 = por %p478, %p479
        $region143: #{custom-call.2} parent=139 // loop_header_branch
          %968 = sbr.rel (%p480) target = $region147
        $region144: #{custom-call.2} parent=139 // loop_body
          loop: start=0, step=1, limit=3
          $region148: #{custom-call.2} parent=144 // loop_pre_header
            _
          $region149: #{custom-call.2} parent=144 // loop_header
            %s482 = sphi 0, %s486
            %p483 = scmp.ge.s32.totalorder %s482, 3
          $region150: #{custom-call.2} parent=144 // loop_header_branch
            %485 = sbr.rel (%p483) target = $region154
          $region151: #{custom-call.2} parent=144 // loop_body
            #allocation25 [shape = 'f32[1024]{0}', space=vmem, size = 0x1000, scoped, tag = 'a_tl_diag vmem']
            #allocation26 [shape = 'f32[1024]{0}', space=vmem, size = 0x1000, scoped, tag = 'a_tr_diag vmem']
            #allocation27 [shape = 'f32[1024]{0}', space=vmem, size = 0x1000, scoped, tag = 'a_br_diag vmem']
            #allocation28 [shape = 'f32[1024]{0}', space=vmem, size = 0x1000, scoped, tag = 'rt1 vmem']
            #allocation29 [shape = 'f32[1024]{0}', space=vmem, size = 0x1000, scoped, tag = 'rt2 vmem']
            #allocation30 [shape = 'f32[1024]{0}', space=vmem, size = 0x1000, scoped, tag = 'c vmem']
            #allocation31 [shape = 'f32[1024]{0}', space=vmem, size = 0x1000, scoped, tag = 's vmem']
            #allocation32 [shape = 'f32[4096]{0}', space=vmem, size = 0x4000, scoped, tag = 'c broadcast']
            #allocation33 [shape = 'f32[4096]{0}', space=vmem, size = 0x4000, scoped, tag = 's broadcast']
            %s487 = smov [#allocation21]
            %s488 = smov [#allocation25]
            %v489 = vlaneseq
            %v490 = vand.u32 %v489, 127
            %v491 = vmov %v490
            %v492 = vlaneseq
            %v493 = vshrl.u32 %v492, 7
            %v494 = vmov %v493
            %v495 = vld [vmem:[%s487] sm:$0x3]
            %vm498 = vcmp.eq.s32.totalorder %v494, %v491
            %v499 = vsel %vm498, %v495, 0.0
            %v500 = vrot.slane %v499, 4
            %v501 = vadd.f32 %v499, %v500
            %v502 = vrot.slane %v501, 2
            %v503 = vadd.f32 %v501, %v502
            %v504 = vrot.slane %v503, 1
            %v505 = vadd.f32 %v503, %v504
            %506 = vst [vmem:[%s488] sm:$0x1] %v505
            %s507 = smov [#allocation22]
            %s508 = smov [#allocation26]
            %v509 = vlaneseq
            %v510 = vand.u32 %v509, 127
            %v511 = vmov %v510
            %v512 = vlaneseq
            %v513 = vshrl.u32 %v512, 7
            %v514 = vmov %v513
            %v515 = vld [vmem:[%s507] sm:$0x3]
            %vm518 = vcmp.eq.s32.totalorder %v514, %v511
            %v519 = vsel %vm518, %v515, 0.0
            %v520 = vrot.slane %v519, 4
            %v521 = vadd.f32 %v519, %v520
            %v522 = vrot.slane %v521, 2
            %v523 = vadd.f32 %v521, %v522
            %v524 = vrot.slane %v523, 1
            %v525 = vadd.f32 %v523, %v524
            %526 = vst [vmem:[%s508] sm:$0x1] %v525
            %s527 = smov [#allocation24]
            %s528 = smov [#allocation27]
            %v529 = vlaneseq
            %v530 = vand.u32 %v529, 127
            %v531 = vmov %v530
            %v532 = vlaneseq
            %v533 = vshrl.u32 %v532, 7
            %v534 = vmov %v533
            %v535 = vld [vmem:[%s527] sm:$0x3]
            %vm538 = vcmp.eq.s32.totalorder %v534, %v531
            %v539 = vsel %vm538, %v535, 0.0
            %v540 = vrot.slane %v539, 4
            %v541 = vadd.f32 %v539, %v540
            %v542 = vrot.slane %v541, 2
            %v543 = vadd.f32 %v541, %v542
            %v544 = vrot.slane %v543, 1
            %v545 = vadd.f32 %v543, %v544
            %546 = vst [vmem:[%s528] sm:$0x1] %v545
            %s547 = smov [#allocation30]
            %s548 = smov [#allocation31]
            %s549 = smov [#allocation25]
            %v550 = vld [vmem:[%s549] sm:$0xff]
            %s551 = smov [#allocation26]
            %v552 = vld [vmem:[%s551] sm:$0xff]
            %s553 = smov [#allocation27]
            %v554 = vld [vmem:[%s553] sm:$0xff]
            %v555 = vsub.f32 %v554, %v550
            %v556 = vmul.f32 2.0, %v552
            %v557 = vrcp.pop %v556
            %v558 = vmul.f32 %v556, %v557
            %v559 = vsub.f32 1.0, %v558
            %v560 = vmul.f32 %v557, %v559
            %v561 = vadd.f32 %v557, %v560
            %vm562 = vweird.f32 %v556
            %vm563 = vweird.f32 %v557
            %vm564 = vmor %vm562, %vm563
            %v565 = vsel %vm564, %v557, %v561
            %v566 = vand.u32 2147483647, %v556
            %vm567 = vcmp.eq.f32.partialorder %v566, 8.507059e+37
            %v568 = vand.u32 %v556, 2147483648
            %v569 = vor.u32 1.1754944e-38, %v568
            %v570 = vsel %vm567, %v569, %v565
            %v571 = vmul.f32 %v555, %v570
            %vm572 = vcmp.ge.f32.partialorder %v571, 0.0
            %v573 = vmul.f32 %v571, %v571
            %v574 = vadd.f32 1.0, %v573
            %v575 = vrsqrt.pop %v574
            %v576 = vmul.f32 %v575, %v574
            %v577 = vmul.f32 %v576, %v575
            %v578 = vmul.f32 0.5, %v577
            %v579 = vsub.f32 1.5, %v578
            %v580 = vmul.f32 %v575, %v579
            %v581 = vmul.f32 %v574, %v580
            %vm582 = vcmp.eq.f32.partialorder %v574, inf
            %v583 = vsel %vm582, %v574, %v581
            %vm584 = vcmp.eq.f32.partialorder %v574, 0.0
            %v585 = vand.u32 %v574, 2147483648
            %v586 = vsel %vm584, %v585, %v583
            %v587 = vxor.u32 %v586, 2147483648
            %v588 = vsel %vm572, %v586, %v587
            %v589 = vadd.f32 %v571, %v588
            %v590 = vrcp.pop %v589
            %v591 = vmul.f32 %v589, %v590
            %v592 = vsub.f32 1.0, %v591
            %v593 = vmul.f32 %v590, %v592
            %v594 = vadd.f32 %v590, %v593
            %vm595 = vweird.f32 %v589
            %vm596 = vweird.f32 %v590
            %vm597 = vmor %vm595, %vm596
            %v598 = vsel %vm597, %v590, %v594
            %v599 = vand.u32 2147483647, %v589
            %vm600 = vcmp.eq.f32.partialorder %v599, 8.507059e+37
            %v601 = vand.u32 %v589, 2147483648
            %v602 = vor.u32 1.1754944e-38, %v601
            %v603 = vsel %vm600, %v602, %v598
            %v604 = vand.u32 2147483647, %v550
            %v605 = vand.u32 2147483647, %v552
            %v606 = vand.u32 2147483647, %v554
            %v607 = vmin.f32 %v604, %v606
            %v608 = vmul.f32 1.1920929e-08, %v607
            %vm609 = vcmp.le.f32.partialorder %v605, %v608
            %v610 = vsel %vm609, 0.0, %v603
            %v611 = vmul.f32 %v610, %v610
            %v612 = vadd.f32 1.0, %v611
            %v613 = vrsqrt.pop %v612
            %v614 = vmul.f32 %v613, %v612
            %v615 = vmul.f32 %v614, %v613
            %v616 = vmul.f32 0.5, %v615
            %v617 = vsub.f32 1.5, %v616
            %v618 = vmul.f32 %v613, %v617
            %vm619 = vweird.f32 %v612
            %vm620 = vweird.f32 %v613
            %vm621 = vmor %vm619, %vm620
            %v622 = vsel %vm621, %v613, %v618
            %v623 = vmul.f32 %v610, %v622
            %v624 = vmul.f32 %v610, %v552
            %v625 = vsub.f32 %v550, %v624
            %v626 = vmul.f32 %v610, %v552
            %v627 = vadd.f32 %v554, %v626
            %s628 = smov [#allocation28]
            %629 = vst [vmem:[%s628] sm:$0xff] %v625
            %s630 = smov [#allocation29]
            %631 = vst [vmem:[%s630] sm:$0xff] %v627
            %s632 = smov %s547
            %633 = vst [vmem:[%s632] sm:$0xff] %v622
            %s634 = smov %s548
            %635 = vst [vmem:[%s634] sm:$0xff] %v623
            %s636 = smov [#allocation30]
            %v637 = vld [vmem:[%s636] ss:$0 sm:$0xff]
            %v638 = vlaneseq
            %v639 = vand.u32 %v638, 127
            %v640 = vmov %v639
            %v641 = vlaneseq
            %v642 = vshrl.u32 %v641, 7
            %v643 = vmov %v642
            %vm645 = vcmp.eq.s32.totalorder %v643, %v640
            %v646 = vsel %vm645, %v637, 0.0
            %647 = vadd.xlane.f32.xlu0 %v646
            %v648 = vpop.xlane.xlu0 %647
            %s649 = smov [#allocation32]
            %650 = vst [vmem:[%s649] sm:$0xff] %v648
            %s651 = smov [#allocation31]
            %v652 = vld [vmem:[%s651] ss:$0 sm:$0xff]
            %v653 = vlaneseq
            %v654 = vand.u32 %v653, 127
            %v655 = vmov %v654
            %v656 = vlaneseq
            %v657 = vshrl.u32 %v656, 7
            %v658 = vmov %v657
            %vm660 = vcmp.eq.s32.totalorder %v658, %v655
            %v661 = vsel %vm660, %v652, 0.0
            %662 = vadd.xlane.f32.xlu0 %v661
            %v663 = vpop.xlane.xlu0 %662
            %s664 = smov [#allocation33]
            %665 = vst [vmem:[%s664] sm:$0xff] %v663
            %s666 = smov [#allocation32]
            %v667 = vld [vmem:[%s666] sm:$0xff]
            %s668 = smov [#allocation33]
            %v669 = vld [vmem:[%s668] sm:$0xff]
            %s670 = smov [#allocation21]
            %s671 = smov [#allocation22]
            %s672 = smov [#allocation23]
            %s673 = smov [#allocation24]
            %v674 = vld [vmem:[%s670] sm:$0x3]
            %v675 = vld [vmem:[%s671] sm:$0x3]
            %v676 = vld [vmem:[%s672] sm:$0x3]
            %v677 = vld [vmem:[%s673] sm:$0x3]
            %v678 = vmul.f32 %v667, %v674
            %v679 = vmul.f32 %v669, %v676
            %v680 = vsub.f32 %v678, %v679
            %v681 = vmul.f32 %v667, %v675
            %v682 = vmul.f32 %v669, %v677
            %v683 = vsub.f32 %v681, %v682
            %v684 = vmul.f32 %v669, %v674
            %v685 = vmul.f32 %v667, %v676
            %v686 = vadd.f32 %v684, %v685
            %v687 = vmul.f32 %v669, %v675
            %v688 = vmul.f32 %v667, %v677
            %v689 = vadd.f32 %v687, %v688
            %690 = vst [vmem:[%s670] sm:$0x3] %v680
            %691 = vst [vmem:[%s671] sm:$0x3] %v683
            %692 = vst [vmem:[%s672] sm:$0x3] %v686
            %693 = vst [vmem:[%s673] sm:$0x3] %v689
            %s694 = smov [#allocation30]
            %v695 = vld [vmem:[%s694] ss:$0 sm:$0xff]
            %s696 = smov [#allocation31]
            %v697 = vld [vmem:[%s696] ss:$0 sm:$0xff]
            %s698 = smov [#allocation21]
            %s699 = smov [#allocation22]
            %s700 = smov [#allocation23]
            %s701 = smov [#allocation24]
            %v702 = vld [vmem:[%s698] sm:$0x3]
            %v703 = vld [vmem:[%s699] sm:$0x3]
            %v704 = vld [vmem:[%s700] sm:$0x3]
            %v705 = vld [vmem:[%s701] sm:$0x3]
            %v706 = vmul.f32 %v695, %v702
            %v707 = vmul.f32 %v697, %v703
            %v708 = vsub.f32 %v706, %v707
            %v709 = vmul.f32 %v697, %v702
            %v710 = vmul.f32 %v695, %v703
            %v711 = vadd.f32 %v709, %v710
            %v712 = vmul.f32 %v695, %v704
            %v713 = vmul.f32 %v697, %v705
            %v714 = vsub.f32 %v712, %v713
            %v715 = vmul.f32 %v697, %v704
            %v716 = vmul.f32 %v695, %v705
            %v717 = vadd.f32 %v715, %v716
            %718 = vst [vmem:[%s698] sm:$0x3] %v708
            %719 = vst [vmem:[%s699] sm:$0x3] %v711
            %720 = vst [vmem:[%s700] sm:$0x3] %v714
            %721 = vst [vmem:[%s701] sm:$0x3] %v717
            %s722 = smov [#allocation21]
            %s723 = smov [#allocation28]
            %v724 = vlaneseq
            %v725 = vand.u32 %v724, 127
            %v726 = vmov %v725
            %v727 = vlaneseq
            %v728 = vshrl.u32 %v727, 7
            %v729 = vmov %v728
            %v730 = vld [vmem:[%s723] ss:$0 sm:$0xff]
            %v731 = vld [vmem:[%s722] sm:$0x3]
            %vm734 = vcmp.eq.s32.totalorder %v729, %v726
            %v735 = vsel %vm734, %v730, %v731
            %736 = vst [vmem:[%s722] sm:$0x3] %v735
            %s737 = smov [#allocation22]
            %v738 = vlaneseq
            %v739 = vand.u32 %v738, 127
            %v740 = vmov %v739
            %v741 = vlaneseq
            %v742 = vshrl.u32 %v741, 7
            %v743 = vmov %v742
            %v744 = vld [vmem:[%s737] sm:$0x3]
            %vm747 = vcmp.eq.s32.totalorder %v743, %v740
            %v748 = vsel %vm747, 0.0, %v744
            %749 = vst [vmem:[%s737] sm:$0x3] %v748
            %s750 = smov [#allocation23]
            %v751 = vlaneseq
            %v752 = vand.u32 %v751, 127
            %v753 = vmov %v752
            %v754 = vlaneseq
            %v755 = vshrl.u32 %v754, 7
            %v756 = vmov %v755
            %v757 = vld [vmem:[%s750] sm:$0x3]
            %vm760 = vcmp.eq.s32.totalorder %v756, %v753
            %v761 = vsel %vm760, 0.0, %v757
            %762 = vst [vmem:[%s750] sm:$0x3] %v761
            %s763 = smov [#allocation24]
            %s764 = smov [#allocation29]
            %v765 = vlaneseq
            %v766 = vand.u32 %v765, 127
            %v767 = vmov %v766
            %v768 = vlaneseq
            %v769 = vshrl.u32 %v768, 7
            %v770 = vmov %v769
            %v771 = vld [vmem:[%s764] ss:$0 sm:$0xff]
            %v772 = vld [vmem:[%s763] sm:$0x3]
            %vm775 = vcmp.eq.s32.totalorder %v770, %v767
            %v776 = vsel %vm775, %v771, %v772
            %777 = vst [vmem:[%s763] sm:$0x3] %v776
            %s778 = smov [#allocation21]
            %s779 = smov [#allocation22]
            %v780 = vld [vmem:[%s779] sm:$0x3]
            %781 = vrot.lane.b32.xlu0 %v780, 1
            %v782 = vpop.permute.xlu0 %781
            %v783 = vld [vmem:[%s778] sm:$0x3]
            %v784 = vld [vmem:[%s778] sm:$0x3]
            %785 = vrot.lane.b32.xlu0 %v784, 1
            %v786 = vpop.permute.xlu0 %785
            %v787 = vlaneseq
            %v788 = vand.u32 %v787, 127
            %vm789 = vcmp.eq.s32.totalorder %v788, 0
            %v790 = vsel %vm789, %v784, %v786
            %v791 = vlaneseq
            %v792 = vand.u32 %v791, 127
            %vm793 = vcmp.eq.s32.totalorder %v792, 1
            %v794 = vsel %vm793, %v782, %v790
            %v795 = vlaneseq
            %v796 = vand.u32 %v795, 127
            %vm797 = vcmp.ge.s32.totalorder %v796, 0
            %vm798 = vcmp.lt.s32.totalorder %v796, 2
            %vm799 = vmand %vm797, %vm798
            %v800 = vsel %vm799, %v794, 0.0
            %v801 = vld [vmem:[%s779] sm:$0x3]
            %802 = vrot.lane.b32.xlu0 %v801, 127
            %v803 = vpop.permute.xlu0 %802
            %v804 = vlaneseq
            %v805 = vand.u32 %v804, 127
            %vm806 = vcmp.eq.s32.totalorder %v805, 1
            %v807 = vsel %vm806, %v783, %v803
            %808 = vst [vmem:[%s778] sm:$0x3] %v800
            %809 = vst [vmem:[%s779] sm:$0x3] %v807
            %s810 = smov [#allocation23]
            %s811 = smov [#allocation24]
            %v812 = vld [vmem:[%s811] sm:$0x3]
            %813 = vrot.lane.b32.xlu0 %v812, 1
            %v814 = vpop.permute.xlu0 %813
            %v815 = vld [vmem:[%s810] sm:$0x3]
            %v816 = vld [vmem:[%s810] sm:$0x3]
            %817 = vrot.lane.b32.xlu0 %v816, 1
            %v818 = vpop.permute.xlu0 %817
            %v819 = vlaneseq
            %v820 = vand.u32 %v819, 127
            %vm821 = vcmp.eq.s32.totalorder %v820, 0
            %v822 = vsel %vm821, %v816, %v818
            %v823 = vlaneseq
            %v824 = vand.u32 %v823, 127
            %vm825 = vcmp.eq.s32.totalorder %v824, 1
            %v826 = vsel %vm825, %v814, %v822
            %v827 = vlaneseq
            %v828 = vand.u32 %v827, 127
            %vm829 = vcmp.ge.s32.totalorder %v828, 0
            %vm830 = vcmp.lt.s32.totalorder %v828, 2
            %vm831 = vmand %vm829, %vm830
            %v832 = vsel %vm831, %v826, 0.0
            %v833 = vld [vmem:[%s811] sm:$0x3]
            %834 = vrot.lane.b32.xlu0 %v833, 127
            %v835 = vpop.permute.xlu0 %834
            %v836 = vlaneseq
            %v837 = vand.u32 %v836, 127
            %vm838 = vcmp.eq.s32.totalorder %v837, 1
            %v839 = vsel %vm838, %v815, %v835
            %840 = vst [vmem:[%s810] sm:$0x3] %v832
            %841 = vst [vmem:[%s811] sm:$0x3] %v839
            %s842 = smov [#allocation21]
            %s843 = smov [#allocation23]
            %v844 = vld [vmem:[%s842] ss:$0 sm:$0xff]
            %s846 = scalar_lea.vmem %s842, 4294967295
            %v847 = vld [vmem:[%s846] sm:$0x2]
            %v848 = vlaneseq
            %v849 = vshrl.u32 %v848, 7
            %vm850 = vcmp.eq.s32.totalorder %v849, 0
            %v851 = vsel %vm850, %v844, %v847
            %s852 = scalar_lea.vmem %s842, 1
            %v853 = vld [vmem:[%s852] ss:$0 sm:$0xff]
            %854 = vst [vmem:[%s842] sm:$0x3] %v851
            %v855 = vld [vmem:[%s843] ss:$0 sm:$0xff]
            %s856 = scalar_lea.vmem %s842, 1
            %857 = vst [vmem:[%s856] sm:$0x1] %v855
            %s858 = scalar_lea.vmem %s843, 1
            %v859 = vld [vmem:[%s858] sm:$0x1]
            %v860 = vlaneseq
            %v861 = vshrl.u32 %v860, 7
            %vm862 = vcmp.eq.s32.totalorder %v861, 1
            %v863 = vsel %vm862, %v853, %v859
            %v864 = vld [vmem:[%s843] ss:$0 sm:$0xff]
            %865 = vst [vmem:[%s843] sm:$0x3] %v863
            %s866 = smov [#allocation22]
            %s867 = smov [#allocation24]
            %v868 = vld [vmem:[%s866] ss:$0 sm:$0xff]
            %s870 = scalar_lea.vmem %s866, 4294967295
            %v871 = vld [vmem:[%s870] sm:$0x2]
            %v872 = vlaneseq
            %v873 = vshrl.u32 %v872, 7
            %vm874 = vcmp.eq.s32.totalorder %v873, 0
            %v875 = vsel %vm874, %v868, %v871
            %s876 = scalar_lea.vmem %s866, 1
            %v877 = vld [vmem:[%s876] ss:$0 sm:$0xff]
            %878 = vst [vmem:[%s866] sm:$0x3] %v875
            %v879 = vld [vmem:[%s867] ss:$0 sm:$0xff]
            %s880 = scalar_lea.vmem %s866, 1
            %881 = vst [vmem:[%s880] sm:$0x1] %v879
            %s882 = scalar_lea.vmem %s867, 1
            %v883 = vld [vmem:[%s882] sm:$0x1]
            %v884 = vlaneseq
            %v885 = vshrl.u32 %v884, 7
            %vm886 = vcmp.eq.s32.totalorder %v885, 1
            %v887 = vsel %vm886, %v877, %v883
            %v888 = vld [vmem:[%s867] ss:$0 sm:$0xff]
            %889 = vst [vmem:[%s867] sm:$0x3] %v887
            %s890 = smov [#allocation32]
            %v891 = vld [vmem:[%s890] sm:$0xff]
            %s892 = smov [#allocation33]
            %v893 = vld [vmem:[%s892] sm:$0xff]
            %s894 = smov [#allocation10]
            %s895 = smov [#allocation13]
            %s896 = smov [#allocation16]
            %s897 = smov [#allocation18]
            %v898 = vld [vmem:[%s894] sm:$0x3]
            %v899 = vld [vmem:[%s895] sm:$0x3]
            %v900 = vld [vmem:[%s896] sm:$0x3]
            %v901 = vld [vmem:[%s897] sm:$0x3]
            %v902 = vmul.f32 %v891, %v898
            %v903 = vmul.f32 %v893, %v900
            %v904 = vsub.f32 %v902, %v903
            %v905 = vmul.f32 %v891, %v899
            %v906 = vmul.f32 %v893, %v901
            %v907 = vsub.f32 %v905, %v906
            %v908 = vmul.f32 %v893, %v898
            %v909 = vmul.f32 %v891, %v900
            %v910 = vadd.f32 %v908, %v909
            %v911 = vmul.f32 %v893, %v899
            %v912 = vmul.f32 %v891, %v901
            %v913 = vadd.f32 %v911, %v912
            %914 = vst [vmem:[%s894] sm:$0x3] %v904
            %915 = vst [vmem:[%s895] sm:$0x3] %v907
            %916 = vst [vmem:[%s896] sm:$0x3] %v910
            %917 = vst [vmem:[%s897] sm:$0x3] %v913
            %s918 = smov [#allocation10]
            %s919 = smov [#allocation16]
            %v920 = vld [vmem:[%s918] ss:$0 sm:$0xff]
            %s922 = scalar_lea.vmem %s918, 4294967295
            %v923 = vld [vmem:[%s922] sm:$0x2]
            %v924 = vlaneseq
            %v925 = vshrl.u32 %v924, 7
            %vm926 = vcmp.eq.s32.totalorder %v925, 0
            %v927 = vsel %vm926, %v920, %v923
            %s928 = scalar_lea.vmem %s918, 1
            %v929 = vld [vmem:[%s928] ss:$0 sm:$0xff]
            %930 = vst [vmem:[%s918] sm:$0x3] %v927
            %v931 = vld [vmem:[%s919] ss:$0 sm:$0xff]
            %s932 = scalar_lea.vmem %s918, 1
            %933 = vst [vmem:[%s932] sm:$0x1] %v931
            %s934 = scalar_lea.vmem %s919, 1
            %v935 = vld [vmem:[%s934] sm:$0x1]
            %v936 = vlaneseq
            %v937 = vshrl.u32 %v936, 7
            %vm938 = vcmp.eq.s32.totalorder %v937, 1
            %v939 = vsel %vm938, %v929, %v935
            %v940 = vld [vmem:[%s919] ss:$0 sm:$0xff]
            %941 = vst [vmem:[%s919] sm:$0x3] %v939
            %s942 = smov [#allocation13]
            %s943 = smov [#allocation18]
            %v944 = vld [vmem:[%s942] ss:$0 sm:$0xff]
            %s946 = scalar_lea.vmem %s942, 4294967295
            %v947 = vld [vmem:[%s946] sm:$0x2]
            %v948 = vlaneseq
            %v949 = vshrl.u32 %v948, 7
            %vm950 = vcmp.eq.s32.totalorder %v949, 0
            %v951 = vsel %vm950, %v944, %v947
            %s952 = scalar_lea.vmem %s942, 1
            %v953 = vld [vmem:[%s952] ss:$0 sm:$0xff]
            %954 = vst [vmem:[%s942] sm:$0x3] %v951
            %v955 = vld [vmem:[%s943] ss:$0 sm:$0xff]
            %s956 = scalar_lea.vmem %s942, 1
            %957 = vst [vmem:[%s956] sm:$0x1] %v955
            %s958 = scalar_lea.vmem %s943, 1
            %v959 = vld [vmem:[%s958] sm:$0x1]
            %v960 = vlaneseq
            %v961 = vshrl.u32 %v960, 7
            %vm962 = vcmp.eq.s32.totalorder %v961, 1
            %v963 = vsel %vm962, %v953, %v959
            %v964 = vld [vmem:[%s943] ss:$0 sm:$0xff]
            %965 = vst [vmem:[%s943] sm:$0x3] %v963
          $region152: #{custom-call.2} parent=144 // loop_footer
            %s486 = sadd.s32 1, %s482
          $region153: #{custom-call.2} parent=144 // loop_footer_branch
            %481 = sbr.rel target = $region149
          $region154: #{custom-call.2} parent=144 // loop_exit
            _
          %s966 = sadd.s32 %s384, 1
        $region145: #{custom-call.2} parent=139 // loop_footer
          _
        $region146: #{custom-call.2} parent=139 // loop_footer_branch
          %383 = sbr.rel target = $region142
        $region147: #{custom-call.2} parent=139 // loop_exit
          _
        %s969 = sand.u32 %s26, 7
        %s970 = scalar_lea.vmem %s296, %s969 [#allocation8]
        %s971 = sand.u32 %s26, 7
        %s972 = scalar_lea.vmem %s302, %s971 [#allocation9]
        %s973 = smov [#allocation21]
        %s974 = smov %s970
        %v975 = vlaneseq
        %v976 = vand.u32 %v975, 127
        %v977 = vmov %v976
        %v978 = vlaneseq
        %v979 = vshrl.u32 %v978, 7
        %v980 = vmov %v979
        %v981 = vld [vmem:[%s973] sm:$0x3]
        %vm984 = vcmp.eq.s32.totalorder %v980, %v977
        %v985 = vsel %vm984, %v981, 0.0
        %v986 = vrot.slane %v985, 4
        %v987 = vadd.f32 %v985, %v986
        %v988 = vrot.slane %v987, 2
        %v989 = vadd.f32 %v987, %v988
        %v990 = vrot.slane %v989, 1
        %v991 = vadd.f32 %v989, %v990
        %992 = vst [vmem:[%s974] sm:$0x1] %v991
        %s993 = smov [#allocation24]
        %s994 = smov %s972
        %v995 = vlaneseq
        %v996 = vand.u32 %v995, 127
        %v997 = vmov %v996
        %v998 = vlaneseq
        %v999 = vshrl.u32 %v998, 7
        %v1000 = vmov %v999
        %v1001 = vld [vmem:[%s993] sm:$0x3]
        %vm1004 = vcmp.eq.s32.totalorder %v1000, %v997
        %v1005 = vsel %vm1004, %v1001, 0.0
        %v1006 = vrot.slane %v1005, 4
        %v1007 = vadd.f32 %v1005, %v1006
        %v1008 = vrot.slane %v1007, 2
        %v1009 = vadd.f32 %v1007, %v1008
        %v1010 = vrot.slane %v1009, 1
        %v1011 = vadd.f32 %v1009, %v1010
        %1012 = vst [vmem:[%s994] sm:$0x1] %v1011
        %s1014 = ssub.s32 4, 1
        %v1015 = vld [vmem:[#allocation10] sm:%s1014]
        %s1017 = ssub.s32 4, 1
        %1018 = vst [vmem:[%s307] sm:%s1017] %v1015
        %s1020 = ssub.s32 4, 1
        %v1021 = vld [vmem:[#allocation13] sm:%s1020]
        %s1023 = ssub.s32 4, 1
        %1024 = vst [vmem:[%s312] sm:%s1023] %v1021
        %s1026 = ssub.s32 4, 1
        %v1027 = vld [vmem:[#allocation16] sm:%s1026]
        %s1029 = ssub.s32 4, 1
        %1030 = vst [vmem:[%s317] sm:%s1029] %v1027
        %s1032 = ssub.s32 4, 1
        %v1033 = vld [vmem:[#allocation18] sm:%s1032]
        %s1035 = ssub.s32 4, 1
        %1036 = vst [vmem:[%s322] sm:%s1035] %v1033
        %s1037 = sand.u32 %s36, 1
        %s1038 = sand.u32 %s36, 1
        %s1039 = smul.addr %s1038, 8
        %s1040 = scalar_lea.vmem [#allocation8], %s1039
        %s1041 = sand.u32 %s64, 1
        %s1042 = sand.u32 %s64, 1
        %s1043 = smul.addr %s1042, 8
        %s1044 = scalar_lea.vmem [#allocation9], %s1043
        %s1045 = sand.u32 %s26, 1
        %s1046 = scalar_lea.sflag [#allocation12], %s1045
        %s1047 = sand.u32 %s26, 1
        %s1048 = smul.addr %s1047, 2
        %s1049 = scalar_lea.vmem [#allocation11], %s1048
        %s1050 = sand.u32 %s26, 1
        %s1051 = scalar_lea.sflag [#allocation15], %s1050
        %s1052 = sand.u32 %s26, 1
        %s1053 = smul.addr %s1052, 2
        %s1054 = scalar_lea.vmem [#allocation14], %s1053
        %s1055 = sand.u32 %s26, 1
        %s1056 = scalar_lea.sflag [#allocation15], %s1055
        %s1057 = sand.u32 %s26, 1
        %s1058 = smul.addr %s1057, 2
        %s1059 = scalar_lea.vmem [#allocation17], %s1058
        %s1060 = sand.u32 %s26, 1
        %s1061 = scalar_lea.sflag [#allocation20], %s1060
        %s1062 = sand.u32 %s26, 1
        %s1063 = smul.addr %s1062, 2
        %s1064 = scalar_lea.vmem [#allocation19], %s1063
        // Predicated region
        $region155: #{custom-call.2} parent=139 // pred_check
          %p1065 = pneg %p46
        $region156: #{custom-call.2} parent=139 // pred_check_branch
          %1067 = sbr.rel (%p1065) target = $region158
        $region157: #{custom-call.2} parent=139 // pred_region
          %s1068 = sshrl.u32 %s26, 3
          %s1069 = smul.addr %s1068, 8
          %s1070 = scalar_lea.vmem %s4, %s1069
          // Predicated region
          $region159: #{custom-call.2} parent=157 // pred_check
            _
          $region160: #{custom-call.2} parent=157 // pred_check_branch
            %1072 = sbr.rel (0) target = $region162
          $region161: #{custom-call.2} parent=157 // pred_region
            // Predicated region
            $region163: #{custom-call.2} parent=161 // pred_check
              _
            $region164: #{custom-call.2} parent=161 // pred_check_branch
              %1074 = sbr.rel (0) target = $region166
            $region165: #{custom-call.2} parent=161 // pred_region
              // Predicated region
              $region178: #{custom-call.2} parent=165 // pred_check
                _
              $region179: #{custom-call.2} parent=165 // pred_check_branch
                %1090 = sbr.rel (0) target = $region181
              $region180: #{custom-call.2} parent=165 // pred_region
                loop: start=0, step=1, limit=1
                $region182: #{custom-call.2} parent=180 // loop_pre_header
                  _
                $region183: #{custom-call.2} parent=180 // loop_header
                  %s1092 = sphi 0, %s1096
                  %p1093 = scmp.ge.s32.totalorder %s1092, 1
                  %s1097 = sphi %s1040, %s1040
                  %s1098 = sphi %s1070, %s1070
                $region184: #{custom-call.2} parent=180 // loop_header_branch
                  %1095 = sbr.rel (%p1093) target = $region188
                $region185: #{custom-call.2} parent=180 // loop_body
                  %v1099 = vld [vmem:[%s1097] sm:$0xff]
                  %1100 = vst [vmem:[%s1098] sm:$0xff] %v1099
                $region186: #{custom-call.2} parent=180 // loop_footer
                  %s1096 = sadd.s32 1, %s1092
                $region187: #{custom-call.2} parent=180 // loop_footer_branch
                  %1091 = sbr.rel target = $region183
                $region188: #{custom-call.2} parent=180 // loop_exit
                  _
              $region181: #{custom-call.2} parent=165 // pred_fallthru
                _
              // Predicated region
              $region189: #{custom-call.2} parent=165 // pred_check
                _
              $region190: #{custom-call.2} parent=165 // pred_check_branch
                %1102 = sbr.rel target = $region192
              $region191: #{custom-call.2} parent=165 // pred_region
                _
              $region192: #{custom-call.2} parent=165 // pred_fallthru
                _
            $region166: #{custom-call.2} parent=161 // pred_fallthru
              _
            // Predicated region
            $region167: #{custom-call.2} parent=161 // pred_check
              _
            $region168: #{custom-call.2} parent=161 // pred_check_branch
              %1076 = sbr.rel target = $region170
            $region169: #{custom-call.2} parent=161 // pred_region
              %s1078 = ssub.s32 256, 1
              loop: start=0, step=1, limit=1
              $region171: #{custom-call.2} parent=169 // loop_pre_header
                _
              $region172: #{custom-call.2} parent=169 // loop_header
                %s1080 = sphi 0, %s1084
                %p1081 = scmp.ge.s32.totalorder %s1080, 1
                %s1085 = sphi %s1040, %s1040
                %s1086 = sphi %s1070, %s1070
              $region173: #{custom-call.2} parent=169 // loop_header_branch
                %1083 = sbr.rel (%p1081) target = $region177
              $region174: #{custom-call.2} parent=169 // loop_body
                %v1087 = vld [vmem:[%s1085] sm:%s1078]
                %1088 = vst [vmem:[%s1086] sm:%s1078] %v1087
              $region175: #{custom-call.2} parent=169 // loop_footer
                %s1084 = sadd.s32 1, %s1080
              $region176: #{custom-call.2} parent=169 // loop_footer_branch
                %1079 = sbr.rel target = $region172
              $region177: #{custom-call.2} parent=169 // loop_exit
                _
            $region170: #{custom-call.2} parent=161 // pred_fallthru
              _
          $region162: #{custom-call.2} parent=157 // pred_fallthru
            _
          %1103 = vnop
        $region158: #{custom-call.2} parent=139 // pred_fallthru
          _
        // Predicated region
        $region193: #{custom-call.2} parent=139 // pred_check
          %p1104 = pneg %p74
        $region194: #{custom-call.2} parent=139 // pred_check_branch
          %1106 = sbr.rel (%p1104) target = $region196
        $region195: #{custom-call.2} parent=139 // pred_region
          %s1107 = sshrl.u32 %s26, 3
          %s1108 = smul.addr %s1107, 8
          %s1109 = scalar_lea.vmem %s5, %s1108
          // Predicated region
          $region197: #{custom-call.2} parent=195 // pred_check
            _
          $region198: #{custom-call.2} parent=195 // pred_check_branch
            %1111 = sbr.rel (0) target = $region200
          $region199: #{custom-call.2} parent=195 // pred_region
            // Predicated region
            $region201: #{custom-call.2} parent=199 // pred_check
              _
            $region202: #{custom-call.2} parent=199 // pred_check_branch
              %1113 = sbr.rel (0) target = $region204
            $region203: #{custom-call.2} parent=199 // pred_region
              // Predicated region
              $region216: #{custom-call.2} parent=203 // pred_check
                _
              $region217: #{custom-call.2} parent=203 // pred_check_branch
                %1129 = sbr.rel (0) target = $region219
              $region218: #{custom-call.2} parent=203 // pred_region
                loop: start=0, step=1, limit=1
                $region220: #{custom-call.2} parent=218 // loop_pre_header
                  _
                $region221: #{custom-call.2} parent=218 // loop_header
                  %s1131 = sphi 0, %s1135
                  %p1132 = scmp.ge.s32.totalorder %s1131, 1
                  %s1136 = sphi %s1044, %s1044
                  %s1137 = sphi %s1109, %s1109
                $region222: #{custom-call.2} parent=218 // loop_header_branch
                  %1134 = sbr.rel (%p1132) target = $region226
                $region223: #{custom-call.2} parent=218 // loop_body
                  %v1138 = vld [vmem:[%s1136] sm:$0xff]
                  %1139 = vst [vmem:[%s1137] sm:$0xff] %v1138
                $region224: #{custom-call.2} parent=218 // loop_footer
                  %s1135 = sadd.s32 1, %s1131
                $region225: #{custom-call.2} parent=218 // loop_footer_branch
                  %1130 = sbr.rel target = $region221
                $region226: #{custom-call.2} parent=218 // loop_exit
                  _
              $region219: #{custom-call.2} parent=203 // pred_fallthru
                _
              // Predicated region
              $region227: #{custom-call.2} parent=203 // pred_check
                _
              $region228: #{custom-call.2} parent=203 // pred_check_branch
                %1141 = sbr.rel target = $region230
              $region229: #{custom-call.2} parent=203 // pred_region
                _
              $region230: #{custom-call.2} parent=203 // pred_fallthru
                _
            $region204: #{custom-call.2} parent=199 // pred_fallthru
              _
            // Predicated region
            $region205: #{custom-call.2} parent=199 // pred_check
              _
            $region206: #{custom-call.2} parent=199 // pred_check_branch
              %1115 = sbr.rel target = $region208
            $region207: #{custom-call.2} parent=199 // pred_region
              %s1117 = ssub.s32 256, 1
              loop: start=0, step=1, limit=1
              $region209: #{custom-call.2} parent=207 // loop_pre_header
                _
              $region210: #{custom-call.2} parent=207 // loop_header
                %s1119 = sphi 0, %s1123
                %p1120 = scmp.ge.s32.totalorder %s1119, 1
                %s1124 = sphi %s1044, %s1044
                %s1125 = sphi %s1109, %s1109
              $region211: #{custom-call.2} parent=207 // loop_header_branch
                %1122 = sbr.rel (%p1120) target = $region215
              $region212: #{custom-call.2} parent=207 // loop_body
                %v1126 = vld [vmem:[%s1124] sm:%s1117]
                %1127 = vst [vmem:[%s1125] sm:%s1117] %v1126
              $region213: #{custom-call.2} parent=207 // loop_footer
                %s1123 = sadd.s32 1, %s1119
              $region214: #{custom-call.2} parent=207 // loop_footer_branch
                %1118 = sbr.rel target = $region210
              $region215: #{custom-call.2} parent=207 // loop_exit
                _
            $region208: #{custom-call.2} parent=199 // pred_fallthru
              _
          $region200: #{custom-call.2} parent=195 // pred_fallthru
            _
          %1142 = vnop
        $region196: #{custom-call.2} parent=139 // pred_fallthru
          _
        %1144 = vsyncadd %s1046, 0
        %s1145 = smul.addr %s26, 2
        %s1146 = scalar_lea.hbm %s6, %s1145
        %s1148 = sshll.u32 %s1049, 4
        %s1149 = int_to_ptr.vmem [resolvable:$true] %s1148
        %s1150 = sshll.u32 %s1146, 4
        %s1151 = int_to_ptr.hbm [resolvable:$true] %s1150
        %1153 = dma.vmem_to_hbm [thread:$0]  %s1149, 32, %s1151, %s1046
        %1155 = vsyncadd %s1051, 0
        %s1156 = smul.addr %s26, 2
        %s1157 = scalar_lea.hbm %s7, %s1156
        %s1159 = sshll.u32 %s1054, 4
        %s1160 = int_to_ptr.vmem [resolvable:$true] %s1159
        %s1161 = sshll.u32 %s1157, 4
        %s1162 = int_to_ptr.hbm [resolvable:$true] %s1161
        %1164 = dma.vmem_to_hbm [thread:$0]  %s1160, 32, %s1162, %s1051
        %1166 = vsyncadd %s1056, 0
        %s1167 = smul.addr %s26, 2
        %s1168 = scalar_lea.hbm %s8, %s1167
        %s1170 = sshll.u32 %s1059, 4
        %s1171 = int_to_ptr.vmem [resolvable:$true] %s1170
        %s1172 = sshll.u32 %s1168, 4
        %s1173 = int_to_ptr.hbm [resolvable:$true] %s1172
        %1175 = dma.vmem_to_hbm [thread:$0]  %s1171, 32, %s1173, %s1056
        %1177 = vsyncadd %s1061, 0
        %s1178 = smul.addr %s26, 2
        %s1179 = scalar_lea.hbm %s9, %s1178
        %s1181 = sshll.u32 %s1064, 4
        %s1182 = int_to_ptr.vmem [resolvable:$true] %s1181
        %s1183 = sshll.u32 %s1179, 4
        %s1184 = int_to_ptr.hbm [resolvable:$true] %s1183
        %1186 = dma.vmem_to_hbm [thread:$0]  %s1182, 32, %s1184, %s1061
      $region140: #{custom-call.2} parent=5 // pred_fallthru
        _
      %p1187 = scmp.le.s32.totalorder 2, %s21
      // Predicated region
      $region231: #{custom-call.2} parent=5 // pred_check
        %p1188 = pneg %p1187
      $region232: #{custom-call.2} parent=5 // pred_check_branch
        %1190 = sbr.rel (%p1188) target = $region234
      $region233: #{custom-call.2} parent=5 // pred_region
        %s1191 = ssub.s32 %s21, 2
        // Predicated region
        $region235: #{custom-call.2} parent=233 // pred_check
          %p1192 = pneg %p52
        $region236: #{custom-call.2} parent=233 // pred_check_branch
          %1194 = sbr.rel (%p1192) target = $region238
        $region237: #{custom-call.2} parent=233 // pred_region
          %s1195 = sand.u32 %s37, 1
          %s1196 = sand.u32 %s37, 1
          %s1197 = smul.addr %s1196, 8
          %s1198 = scalar_lea.vmem [#allocation8], %s1197
        $region238: #{custom-call.2} parent=233 // pred_fallthru
          _
        // Predicated region
        $region239: #{custom-call.2} parent=233 // pred_check
          %p1199 = pneg %p80
        $region240: #{custom-call.2} parent=233 // pred_check_branch
          %1201 = sbr.rel (%p1199) target = $region242
        $region241: #{custom-call.2} parent=233 // pred_region
          %s1202 = sand.u32 %s65, 1
          %s1203 = sand.u32 %s65, 1
          %s1204 = smul.addr %s1203, 8
          %s1205 = scalar_lea.vmem [#allocation9], %s1204
        $region242: #{custom-call.2} parent=233 // pred_fallthru
          _
        %s1206 = sand.u32 %s27, 1
        %s1207 = scalar_lea.sflag [#allocation12], %s1206
        %s1208 = sand.u32 %s27, 1
        %s1209 = smul.addr %s1208, 2
        %s1210 = scalar_lea.vmem [#allocation11], %s1209
        %1212 = dma.done %s1207, 32
        %s1213 = sand.u32 %s27, 1
        %s1214 = scalar_lea.sflag [#allocation15], %s1213
        %s1215 = sand.u32 %s27, 1
        %s1216 = smul.addr %s1215, 2
        %s1217 = scalar_lea.vmem [#allocation14], %s1216
        %1219 = dma.done %s1214, 32
        %s1220 = sand.u32 %s27, 1
        %s1221 = scalar_lea.sflag [#allocation15], %s1220
        %s1222 = sand.u32 %s27, 1
        %s1223 = smul.addr %s1222, 2
        %s1224 = scalar_lea.vmem [#allocation17], %s1223
        %1226 = dma.done %s1221, 32
        %s1227 = sand.u32 %s27, 1
        %s1228 = scalar_lea.sflag [#allocation20], %s1227
        %s1229 = sand.u32 %s27, 1
        %s1230 = smul.addr %s1229, 2
        %s1231 = scalar_lea.vmem [#allocation19], %s1230
        %1233 = dma.done %s1228, 32
      $region234: #{custom-call.2} parent=5 // pred_fallthru
        _
    $region6: #{custom-call.2} parent=1 // loop_footer
      %s25 = sadd.s32 1, %s21
    $region7: #{custom-call.2} parent=1 // loop_footer_branch
      %20 = sbr.rel target = $region3
    $region8: #{custom-call.2} parent=1 // loop_exit
      _
    %1234 = vsyncpa [#allocation12], 1
    %s1235 = scalar_lea.sflag [#allocation12], 1
    %1236 = vsyncpa %s1235, 1
    %1237 = vsyncpa [#allocation15], 1
    %s1238 = scalar_lea.sflag [#allocation15], 1
    %1239 = vsyncpa %s1238, 1
    %1240 = vsyncpa [#allocation20], 1
    %s1241 = scalar_lea.sflag [#allocation20], 1
    %1242 = vsyncpa %s1241, 1

// kernel: custom-call
$region0: #{custom-call}
  %s0 = inlined_call_operand.vmem [shape: f32[8,4], index: 0, kind: input, shape index: {}]
  %s1 = inlined_call_operand.vmem [shape: f32[8,4], index: 1, kind: input, shape index: {}]
  %s2 = inlined_call_operand.vmem [shape: c64[8,4], index: 2, kind: output, shape index: {}]
  %s3 = scalar_lea.vmem %s2, 8
  %v4 = vld [vmem:[%s0] sm:$0xff]
  %5 = vst [vmem:[%s2] sm:$0xff] %v4
  %v6 = vld [vmem:[%s1] sm:$0xff]
  %7 = vst [vmem:[%s3] sm:$0xff] %v6

// kernel: forward.1
$region0: #{forward.1}
  #allocation0 [shape = 'u32[]', space=smem, size = 0x4, offset = 0x4, fixed_abs, tag = 'smem constant byte address 0x4 - core index']
  #allocation1 [shape = 'u32[72,128]{1,0:T(1,128)}', space=vmem, size = 0x9000, scoped, tag = 'internal scratch']
  %s0 = inlined_call_operand.vmem [shape: f32[8,4], index: 0, kind: input, shape index: {}]
  %s1 = inlined_call_operand.vmem [shape: f32[4,128], index: 1, kind: input, shape index: {}]
  %s2 = inlined_call_operand.vmem [shape: f32[1,128], index: 2, kind: input, shape index: {}]
  %s3 = inlined_call_operand.hbm [shape: f32[1,128,128], index: 3, kind: input, shape index: {}]
  %s4 = inlined_call_operand.vmem [shape: f32[1,1,128], index: 4, kind: input, shape index: {}]
  %s5 = inlined_call_operand.hbm [shape: f32[128,128], index: 5, kind: input, shape index: {}]
  %s6 = inlined_call_operand.vmem [shape: f32[1,128], index: 6, kind: input, shape index: {}]
  %s7 = inlined_call_operand.vmem [shape: f32[8,128], index: 7, kind: output, shape index: {}]
  %s8 = sld [smem:[#allocation0]]
  $region46: #{forward.1} parent=0
    _
  %s10 = ssub.s32 1, %s8
  %s11 = scalar_select 0, %s10, %s8
  $region1: #{forward.1} parent=0
    #allocation2 [shape = 'u8[65536]{0}', space=vmem, size = 0x10000, scoped, tag = 'input window, operand 3, single buffered']
    #allocation3 [shape = 's32[1]{0}', space=sflag, size = 0x4, scoped, tag = 'scoped memory for forward.1']
    #allocation4 [shape = 'u8[65536]{0}', space=vmem, size = 0x10000, scoped, tag = 'input window, operand 5, single buffered']
    #allocation5 [shape = 's32[1]{0}', space=sflag, size = 0x4, scoped, tag = 'scoped memory for forward.1']
    %12 = vsyncpa [#allocation3], 0
    %13 = vsyncpa [#allocation5], 0
    // Predicated region
    $region2: #{forward.1} parent=1 // pred_check
      _
    $region3: #{forward.1} parent=1 // pred_check_branch
      %15 = sbr.rel (0) target = $region5
    $region4: #{forward.1} parent=1 // pred_region
      _
    $region5: #{forward.1} parent=1 // pred_fallthru
      _
    // Predicated region
    $region6: #{forward.1} parent=1 // pred_check
      _
    $region7: #{forward.1} parent=1 // pred_check_branch
      %17 = sbr.rel (0) target = $region9
    $region8: #{forward.1} parent=1 // pred_region
      _
    $region9: #{forward.1} parent=1 // pred_fallthru
      _
    // Predicated region
    $region10: #{forward.1} parent=1 // pred_check
      _
    $region11: #{forward.1} parent=1 // pred_check_branch
      %19 = sbr.rel (0) target = $region13
    $region12: #{forward.1} parent=1 // pred_region
      _
    $region13: #{forward.1} parent=1 // pred_fallthru
      _
    // Predicated region
    $region14: #{forward.1} parent=1 // pred_check
      _
    $region15: #{forward.1} parent=1 // pred_check_branch
      %21 = sbr.rel (0) target = $region17
    $region16: #{forward.1} parent=1 // pred_region
      %23 = vsyncadd [#allocation3], 0
      %s24 = sshll.u32 %s3, 4
      %s25 = int_to_ptr.hbm [resolvable:$true] %s24
      %s26 = sshll.u32 [#allocation2], 4
      %s27 = int_to_ptr.vmem [resolvable:$true] %s26
      %32 = dma.hbm_to_vmem [thread:$0]  %s25, 2048, %s27, [#allocation3], 128, 128, 8
    $region17: #{forward.1} parent=1 // pred_fallthru
      _
    // Predicated region
    $region18: #{forward.1} parent=1 // pred_check
      _
    $region19: #{forward.1} parent=1 // pred_check_branch
      %34 = sbr.rel (0) target = $region21
    $region20: #{forward.1} parent=1 // pred_region
      _
    $region21: #{forward.1} parent=1 // pred_fallthru
      _
    // Predicated region
    $region22: #{forward.1} parent=1 // pred_check
      _
    $region23: #{forward.1} parent=1 // pred_check_branch
      %36 = sbr.rel (0) target = $region25
    $region24: #{forward.1} parent=1 // pred_region
      %38 = vsyncadd [#allocation5], 0
      %s39 = sshll.u32 %s5, 4
      %s40 = int_to_ptr.hbm [resolvable:$true] %s39
      %s41 = sshll.u32 [#allocation4], 4
      %s42 = int_to_ptr.vmem [resolvable:$true] %s41
      %47 = dma.hbm_to_vmem [thread:$0]  %s40, 2048, %s42, [#allocation5], 128, 128, 8
    $region25: #{forward.1} parent=1 // pred_fallthru
      _
    // Predicated region
    $region26: #{forward.1} parent=1 // pred_check
      _
    $region27: #{forward.1} parent=1 // pred_check_branch
      %49 = sbr.rel (0) target = $region29
    $region28: #{forward.1} parent=1 // pred_region
      _
    $region29: #{forward.1} parent=1 // pred_fallthru
      _
    // Predicated region
    $region30: #{forward.1} parent=1 // pred_check
      _
    $region31: #{forward.1} parent=1 // pred_check_branch
      %51 = sbr.rel (0) target = $region33
    $region32: #{forward.1} parent=1 // pred_region
      %53 = dma.done [#allocation3], 2048
    $region33: #{forward.1} parent=1 // pred_fallthru
      _
    // Predicated region
    $region34: #{forward.1} parent=1 // pred_check
      _
    $region35: #{forward.1} parent=1 // pred_check_branch
      %55 = sbr.rel (0) target = $region37
    $region36: #{forward.1} parent=1 // pred_region
      %57 = dma.done [#allocation5], 2048
    $region37: #{forward.1} parent=1 // pred_fallthru
      _
    %v58 = vld [vmem:[%s0] sm:$0xff]
    %v59 = vld [vmem:[%s1] sm:$0xf]
    %v60 = vld [vmem:[%s2] sm:$0x1]
    %v62 = vperm.slane %v60, 0
    %vm64 = vcmask 31744
    %v66 = vsel %vm64, %v58, 0
    %vm68 = vcmask 1043456
    %v70 = vsel %vm68, %v59, 0
    %72 = vmatpush.msra.mxu0 0.0
    %73 = vmatpush.msra.mxu0 0.0
    %74 = vmatpush.msra.mxu0 0.0
    %75 = vmatpush.msra.mxu0 0.0
    %76 = vmatpush.msra.mxu0 0.0
    %77 = vmatpush.msra.mxu0 0.0
    %78 = vmatpush.msra.mxu0 0.0
    %79 = vmatpush.msra.mxu0 0.0
    %80 = vmatpush.msra.mxu0 0.0
    %81 = vmatpush.msra.mxu0 0.0
    %82 = vmatpush.msra.mxu0 0.0
    %83 = vmatpush.msra.mxu0 0.0
    %84 = vmatpush.msra.mxu0 0.0
    %85 = vmatpush.msra.mxu0 0.0
    %86 = vmatpush.msra.mxu0 0.0
    %87 = vmatpush.msra.mxu0 %v70
    %88 = vmatmul.f32.gmra.mxu0 %v66
    %v89 = vpop.f32.mrf.mxu0
    %v90 = vadd.f32 %v62, %v89
    %91 = vdwg.mxu0
    %v92 = vmul.f32 %v90, 0.5
    %v93 = vmul.f32 %v90, 0.70710677
    %v94 = vmul.f32 %v93, %v93
    %v95 = vmin.f32 16.0, %v94
    %v96 = vmul.f32 %v95, 2.1237322e-06
    %v97 = vadd.f32 %v96, 0.00028619796
    %v98 = vmul.f32 %v95, %v97
    %v99 = vadd.f32 %v98, 0.0036580483
    %v100 = vmul.f32 %v95, %v99
    %v101 = vadd.f32 %v100, 0.05243302
    %v102 = vmul.f32 %v95, %v101
    %v103 = vadd.f32 %v102, 0.18741608
    %v104 = vmul.f32 %v95, %v103
    %v105 = vadd.f32 %v104, 1.1283791
    %v106 = vmul.f32 %v93, %v105
    %v107 = vmul.f32 %v95, 3.8918573e-05
    %v108 = vadd.f32 %v107, 0.001143296
    %v109 = vmul.f32 %v95, %v108
    %v110 = vadd.f32 %v109, 0.014752088
    %v111 = vmul.f32 %v95, %v110
    %v112 = vadd.f32 %v111, 0.112945676
    %v113 = vmul.f32 %v95, %v112
    %v114 = vadd.f32 %v113, 0.4994258
    %v115 = vmul.f32 %v95, %v114
    %v116 = vadd.f32 %v115, 1.0
    %v117 = vrcp.pop %v116
    %v118 = vmul.f32 %v116, %v117
    %v119 = vsub.f32 1.0, %v118
    %v120 = vmul.f32 %v117, %v119
    %v121 = vadd.f32 %v117, %v120
    %vm122 = vweird.f32 %v116
    %vm123 = vweird.f32 %v117
    %vm124 = vmor %vm122, %vm123
    %v125 = vsel %vm124, %v117, %v121
    %v126 = vand.u32 2147483647, %v116
    %vm127 = vcmp.eq.f32.partialorder %v126, 8.507059e+37
    %v128 = vand.u32 %v116, 2147483648
    %v129 = vor.u32 1.1754944e-38, %v128
    %v130 = vsel %vm127, %v129, %v125
    %v131 = vmul.f32 %v106, %v130
    %v132 = vmin.f32 %v131, 1.0
    %v133 = vmax.f32 %v132, -1.0
    %v134 = vadd.f32 %v133, 1.0
    %v135 = vmul.f32 %v92, %v134
    %v136 = vld [vmem:[#allocation2] sm:$0xff]
    %v137 = vld [vmem:[#allocation2 + $0x8] sm:$0xff]
    %v138 = vld [vmem:[#allocation2 + $0x10] sm:$0xff]
    %v139 = vld [vmem:[#allocation2 + $0x18] sm:$0xff]
    %v140 = vld [vmem:[#allocation2 + $0x20] sm:$0xff]
    %v141 = vld [vmem:[#allocation2 + $0x28] sm:$0xff]
    %v142 = vld [vmem:[#allocation2 + $0x30] sm:$0xff]
    %v143 = vld [vmem:[#allocation2 + $0x38] sm:$0xff]
    %v144 = vld [vmem:[#allocation2 + $0x40] sm:$0xff]
    %v145 = vld [vmem:[#allocation2 + $0x48] sm:$0xff]
    %v146 = vld [vmem:[#allocation2 + $0x50] sm:$0xff]
    %v147 = vld [vmem:[#allocation2 + $0x58] sm:$0xff]
    %v148 = vld [vmem:[#allocation2 + $0x60] sm:$0xff]
    %v149 = vld [vmem:[#allocation2 + $0x68] sm:$0xff]
    %v150 = vld [vmem:[#allocation2 + $0x70] sm:$0xff]
    %v151 = vld [vmem:[#allocation2 + $0x78] sm:$0xff]
    %v152 = vld [vmem:[%s4] sm:$0x1]
    %v154 = vperm.slane %v152, 0
    %156 = vmatpush.msra.mxu0 %v151
    %157 = vmatpush.msra.mxu0 %v150
    %158 = vmatpush.msra.mxu0 %v149
    %159 = vmatpush.msra.mxu0 %v148
    %160 = vmatpush.msra.mxu0 %v147
    %161 = vmatpush.msra.mxu0 %v146
    %162 = vmatpush.msra.mxu0 %v145
    %163 = vmatpush.msra.mxu0 %v144
    %164 = vmatpush.msra.mxu0 %v143
    %165 = vmatpush.msra.mxu0 %v142
    %166 = vmatpush.msra.mxu0 %v141
    %167 = vmatpush.msra.mxu0 %v140
    %168 = vmatpush.msra.mxu0 %v139
    %169 = vmatpush.msra.mxu0 %v138
    %170 = vmatpush.msra.mxu0 %v137
    %171 = vmatpush.msra.mxu0 %v136
    %172 = vmatmul.f32.gmra.mxu0 %v135
    %v173 = vpop.f32.mrf.mxu0
    %v174 = vadd.f32 %v154, %v173
    %175 = vdwg.mxu0
    %v176 = vmul.f32 %v174, 0.5
    %v177 = vmul.f32 %v174, 0.70710677
    %v178 = vmul.f32 %v177, %v177
    %v179 = vmin.f32 16.0, %v178
    %v180 = vmul.f32 %v179, 2.1237322e-06
    %v181 = vadd.f32 %v180, 0.00028619796
    %v182 = vmul.f32 %v179, %v181
    %v183 = vadd.f32 %v182, 0.0036580483
    %v184 = vmul.f32 %v179, %v183
    %v185 = vadd.f32 %v184, 0.05243302
    %v186 = vmul.f32 %v179, %v185
    %v187 = vadd.f32 %v186, 0.18741608
    %v188 = vmul.f32 %v179, %v187
    %v189 = vadd.f32 %v188, 1.1283791
    %v190 = vmul.f32 %v177, %v189
    %v191 = vmul.f32 %v179, 3.8918573e-05
    %v192 = vadd.f32 %v191, 0.001143296
    %v193 = vmul.f32 %v179, %v192
    %v194 = vadd.f32 %v193, 0.014752088
    %v195 = vmul.f32 %v179, %v194
    %v196 = vadd.f32 %v195, 0.112945676
    %v197 = vmul.f32 %v179, %v196
    %v198 = vadd.f32 %v197, 0.4994258
    %v199 = vmul.f32 %v179, %v198
    %v200 = vadd.f32 %v199, 1.0
    %v201 = vrcp.pop %v200
    %v202 = vmul.f32 %v200, %v201
    %v203 = vsub.f32 1.0, %v202
    %v204 = vmul.f32 %v201, %v203
    %v205 = vadd.f32 %v201, %v204
    %vm206 = vweird.f32 %v200
    %vm207 = vweird.f32 %v201
    %vm208 = vmor %vm206, %vm207
    %v209 = vsel %vm208, %v201, %v205
    %v210 = vand.u32 2147483647, %v200
    %vm211 = vcmp.eq.f32.partialorder %v210, 8.507059e+37
    %v212 = vand.u32 %v200, 2147483648
    %v213 = vor.u32 1.1754944e-38, %v212
    %v214 = vsel %vm211, %v213, %v209
    %v215 = vmul.f32 %v190, %v214
    %v216 = vmin.f32 %v215, 1.0
    %v217 = vmax.f32 %v216, -1.0
    %v218 = vadd.f32 %v217, 1.0
    %v219 = vmul.f32 %v176, %v218
    %v220 = vld [vmem:[#allocation4] sm:$0xff]
    %v221 = vld [vmem:[#allocation4 + $0x8] sm:$0xff]
    %v222 = vld [vmem:[#allocation4 + $0x10] sm:$0xff]
    %v223 = vld [vmem:[#allocation4 + $0x18] sm:$0xff]
    %v224 = vld [vmem:[#allocation4 + $0x20] sm:$0xff]
    %v225 = vld [vmem:[#allocation4 + $0x28] sm:$0xff]
    %v226 = vld [vmem:[#allocation4 + $0x30] sm:$0xff]
    %v227 = vld [vmem:[#allocation4 + $0x38] sm:$0xff]
    %v228 = vld [vmem:[#allocation4 + $0x40] sm:$0xff]
    %v229 = vld [vmem:[#allocation4 + $0x48] sm:$0xff]
    %v230 = vld [vmem:[#allocation4 + $0x50] sm:$0xff]
    %v231 = vld [vmem:[#allocation4 + $0x58] sm:$0xff]
    %v232 = vld [vmem:[#allocation4 + $0x60] sm:$0xff]
    %v233 = vld [vmem:[#allocation4 + $0x68] sm:$0xff]
    %v234 = vld [vmem:[#allocation4 + $0x70] sm:$0xff]
    %v235 = vld [vmem:[#allocation4 + $0x78] sm:$0xff]
    %v236 = vld [vmem:[%s6] sm:$0x1]
    %v238 = vperm.slane %v236, 0
    %240 = vmatpush.msra.mxu0 %v235
    %241 = vmatpush.msra.mxu0 %v234
    %242 = vmatpush.msra.mxu0 %v233
    %243 = vmatpush.msra.mxu0 %v232
    %244 = vmatpush.msra.mxu0 %v231
    %245 = vmatpush.msra.mxu0 %v230
    %246 = vmatpush.msra.mxu0 %v229
    %247 = vmatpush.msra.mxu0 %v228
    %248 = vmatpush.msra.mxu0 %v227
    %249 = vmatpush.msra.mxu0 %v226
    %250 = vmatpush.msra.mxu0 %v225
    %251 = vmatpush.msra.mxu0 %v224
    %252 = vmatpush.msra.mxu0 %v223
    %253 = vmatpush.msra.mxu0 %v222
    %254 = vmatpush.msra.mxu0 %v221
    %255 = vmatpush.msra.mxu0 %v220
    %256 = vmatmul.f32.gmra.mxu0 %v219
    %v257 = vpop.f32.mrf.mxu0
    %v258 = vadd.f32 %v238, %v257
    %259 = vdwg.mxu0
    %260 = vst [vmem:[%s7] sm:$0xff] %v258
    // Predicated region
    $region38: #{forward.1} parent=1 // pred_check
      _
    $region39: #{forward.1} parent=1 // pred_check_branch
      %262 = sbr.rel (0) target = $region41
    $region40: #{forward.1} parent=1 // pred_region
      _
    $region41: #{forward.1} parent=1 // pred_fallthru
      _
    // Predicated region
    $region42: #{forward.1} parent=1 // pred_check
      _
    $region43: #{forward.1} parent=1 // pred_check_branch
      %264 = sbr.rel (0) target = $region45
    $region44: #{forward.1} parent=1 // pred_region
      _
    $region45: #{forward.1} parent=1 // pred_fallthru
      _
    %265 = vsyncpa [#allocation3], 1
    %266 = vsyncpa [#allocation5], 1

</llo_original>
